<compile_context>
chip_gen: v6e
topology: v6e:2x2x1
jax: 0.10.0
libtpu: 0.0.40
codegen_flags: <defaults>
</compile_context>

<pallas_src>
import functools

import jax
import jax.numpy as jnp
from jax.experimental import pallas as pl
from jax.experimental.pallas import tpu as pltpu

_EPS = 1e-5
_LANE = 128                      # pad K / Cout to multiples of the lane width
_TILE_M_MAX = 512                # rows per grid step (fits v7x 64 MiB VMEM w/ headroom)
_VMEM_LIMIT = 48 * 1024 * 1024   # explicit scoped-VMEM cap (< v7x 64 MiB physical)
_MATMUL_DTYPE = jnp.bfloat16     # MXU input dtype (bf16 ~3x MXU on v6e/v7x)
_STORE_DTYPE = jnp.bfloat16      # dtype for conv-output intermediates in HBM


def _round_up(x, m):
    return (x + m - 1) // m * m


def _choose_tile_m(m_real):
    """Largest M tile <= _TILE_M_MAX (16-row aligned for bf16 packing)."""
    n_tiles = -(-m_real // _TILE_M_MAX)
    return _round_up(-(-m_real // n_tiles), 16)


def _compiler_params():
    return pltpu.CompilerParams(
        dimension_semantics=("parallel",),   # independent M tiles -> megacore on v7x
        vmem_limit_bytes=_VMEM_LIMIT)


# ----------------------------- Pallas kernels ----------------------------- #

def _matmul_stats_kernel(p_ref, w_ref, y_ref, st_ref):
    """Pass 1: y = patches @ w_eff; per-tile per-channel sum / sum-of-squares.

    Stats are taken from the f32 accumulator BEFORE the (optional) bf16
    downcast of the stored intermediate.
    """
    y = jnp.dot(p_ref[...], w_ref[...], preferred_element_type=jnp.float32)
    y_ref[...] = y.astype(y_ref.dtype)
    s = jnp.sum(y, axis=0, keepdims=True)          # cross-sublane reduce -> XLU
    sq = jnp.sum(y * y, axis=0, keepdims=True)
    st_ref[0] = jnp.concatenate([s, sq], axis=0)   # (2, Cout_p)


def _matmul2_stats_kernel(p2_ref, w2_ref, psc_ref, wsc_ref,
                          y2_ref, ysc_ref, st2_ref, stsc_ref):
    """Pass 1 for conv2 + fused projection shortcut: two matmuls + two stats."""
    y2 = jnp.dot(p2_ref[...], w2_ref[...], preferred_element_type=jnp.float32)
    ysc = jnp.dot(psc_ref[...], wsc_ref[...], preferred_element_type=jnp.float32)
    y2_ref[...] = y2.astype(y2_ref.dtype)
    ysc_ref[...] = ysc.astype(ysc_ref.dtype)
    st2_ref[0] = jnp.concatenate(
        [jnp.sum(y2, axis=0, keepdims=True),
         jnp.sum(y2 * y2, axis=0, keepdims=True)], axis=0)
    stsc_ref[0] = jnp.concatenate(
        [jnp.sum(ysc, axis=0, keepdims=True),
         jnp.sum(ysc * ysc, axis=0, keepdims=True)], axis=0)


def _bn_relu_kernel(y_ref, st_ref, o_ref):
    """Pass 2 (conv1): out = relu((y - mean) * invstd)."""
    mean, invstd = st_ref[0:1, :], st_ref[1:2, :]
    y = y_ref[...].astype(jnp.float32)
    o_ref[...] = jnp.maximum((y - mean) * invstd, 0.0).astype(o_ref.dtype)


def _bn_add_bn_relu_kernel(y2_ref, st2_ref, ysc_ref, stsc_ref, o_ref):
    """Pass 2 (conv2, projection shortcut): relu(quant(bn2(y2)) + bn3(ysc))."""
    m2, i2 = st2_ref[0:1, :], st2_ref[1:2, :]
    msc, isc = stsc_ref[0:1, :], stsc_ref[1:2, :]
    out = (y2_ref[...].astype(jnp.float32) - m2) * i2
    # TODO(synk): QuantLayer(linear_cadence_hist, word_length=16) applied as identity.
    sc = (ysc_ref[...].astype(jnp.float32) - msc) * isc
    o_ref[...] = jnp.maximum(out + sc, 0.0)


def _bn_add_res_relu_kernel(y2_ref, st2_ref, res_ref, o_ref):
    """Pass 2 (conv2, identity shortcut): relu(quant(bn2(y2)) + x)."""
    m2, i2 = st2_ref[0:1, :], st2_ref[1:2, :]
    # TODO(synk): QuantLayer applied as identity.
    out = (y2_ref[...].astype(jnp.float32) - m2) * i2
    o_ref[...] = jnp.maximum(out + res_ref[...], 0.0)


# --------------------------- pallas_call wrappers --------------------------- #

def _conv_pass1(patches, w_eff, tile_m):
    m_pad, k_pad = patches.shape
    cout_p = w_eff.shape[1]
    nt = m_pad // tile_m
    return pl.pallas_call(
        _matmul_stats_kernel,
        out_shape=(jax.ShapeDtypeStruct((m_pad, cout_p), _STORE_DTYPE),
                   jax.ShapeDtypeStruct((nt, 2, cout_p), jnp.float32)),
        grid=(nt,),
        in_specs=[pl.BlockSpec((tile_m, k_pad), lambda i: (i, 0)),
                  pl.BlockSpec((k_pad, cout_p), lambda i: (0, 0))],
        out_specs=(pl.BlockSpec((tile_m, cout_p), lambda i: (i, 0)),
                   pl.BlockSpec((1, 2, cout_p), lambda i: (i, 0, 0))),
        compiler_params=_compiler_params(),
    )(patches, w_eff)


def _conv2_shortcut_pass1(p2, w2, psc, wsc, tile_m):
    m_pad, k2_p = p2.shape
    ksc_p = psc.shape[1]
    cout_p = w2.shape[1]
    nt = m_pad // tile_m
    return pl.pallas_call(
        _matmul2_stats_kernel,
        out_shape=(jax.ShapeDtypeStruct((m_pad, cout_p), _STORE_DTYPE),
                   jax.ShapeDtypeStruct((m_pad, cout_p), _STORE_DTYPE),
                   jax.ShapeDtypeStruct((nt, 2, cout_p), jnp.float32),
                   jax.ShapeDtypeStruct((nt, 2, cout_p), jnp.float32)),
        grid=(nt,),
        in_specs=[pl.BlockSpec((tile_m, k2_p), lambda i: (i, 0)),
                  pl.BlockSpec((k2_p, cout_p), lambda i: (0, 0)),
                  pl.BlockSpec((tile_m, ksc_p), lambda i: (i, 0)),
                  pl.BlockSpec((ksc_p, cout_p), lambda i: (0, 0))],
        out_specs=(pl.BlockSpec((tile_m, cout_p), lambda i: (i, 0)),
                   pl.BlockSpec((tile_m, cout_p), lambda i: (i, 0)),
                   pl.BlockSpec((1, 2, cout_p), lambda i: (i, 0, 0)),
                   pl.BlockSpec((1, 2, cout_p), lambda i: (i, 0, 0))),
        compiler_params=_compiler_params(),
    )(p2, w2, psc, wsc)


def _bn_relu(y, stats, tile_m, out_dtype):
    m_pad, cout_p = y.shape
    nt = m_pad // tile_m
    return pl.pallas_call(
        _bn_relu_kernel,
        out_shape=jax.ShapeDtypeStruct((m_pad, cout_p), out_dtype),
        grid=(nt,),
        in_specs=[pl.BlockSpec((tile_m, cout_p), lambda i: (i, 0)),
                  pl.BlockSpec((2, cout_p), lambda i: (0, 0))],
        out_specs=pl.BlockSpec((tile_m, cout_p), lambda i: (i, 0)),
        compiler_params=_compiler_params(),
    )(y, stats)


def _bn_add_bn_relu(y2, st2, ysc, stsc, tile_m):
    m_pad, cout_p = y2.shape
    nt = m_pad // tile_m
    return pl.pallas_call(
        _bn_add_bn_relu_kernel,
        out_shape=jax.ShapeDtypeStruct((m_pad, cout_p), jnp.float32),
        grid=(nt,),
        in_specs=[pl.BlockSpec((tile_m, cout_p), lambda i: (i, 0)),
                  pl.BlockSpec((2, cout_p), lambda i: (0, 0)),
                  pl.BlockSpec((tile_m, cout_p), lambda i: (i, 0)),
                  pl.BlockSpec((2, cout_p), lambda i: (0, 0))],
        out_specs=pl.BlockSpec((tile_m, cout_p), lambda i: (i, 0)),
        compiler_params=_compiler_params(),
    )(y2, st2, ysc, stsc)


def _bn_add_res_relu(y2, st2, res, tile_m):
    m_pad, cout_p = y2.shape
    nt = m_pad // tile_m
    return pl.pallas_call(
        _bn_add_res_relu_kernel,
        out_shape=jax.ShapeDtypeStruct((m_pad, cout_p), jnp.float32),
        grid=(nt,),
        in_specs=[pl.BlockSpec((tile_m, cout_p), lambda i: (i, 0)),
                  pl.BlockSpec((2, cout_p), lambda i: (0, 0)),
                  pl.BlockSpec((tile_m, cout_p), lambda i: (i, 0))],
        out_specs=pl.BlockSpec((tile_m, cout_p), lambda i: (i, 0)),
        compiler_params=_compiler_params(),
    )(y2, st2, res)


# ------------------------------- JAX glue ---------------------------------- #

def _finalize_stats(partials, m_real):
    """(nt, 2, C) partial sums -> (2, C) [mean ; 1/sqrt(var + eps)] (f32)."""
    s = jnp.sum(partials[:, 0, :], axis=0)
    sq = jnp.sum(partials[:, 1, :], axis=0)
    mean = s / m_real
    var = jnp.maximum(sq / m_real - mean * mean, 0.0)   # guard cancellation
    invstd = jax.lax.rsqrt(var + _EPS)
    return jnp.stack([mean, invstd], axis=0)


def _im2col(x_nhwc, ksize, stride, pad):
    """Conv patches: (N*Ho*Wo, k*k*C), Ho, Wo.
    TODO(synk): replace with in-kernel halo'd patch building to cut 9x HBM bytes."""
    n, h, w, c = x_nhwc.shape
    xp = jnp.pad(x_nhwc, ((0, 0), (pad, pad), (pad, pad), (0, 0)))
    ho = (h + 2 * pad - ksize) // stride + 1
    wo = (w + 2 * pad - ksize) // stride + 1
    cols = []
    for ky in range(ksize):
        for kx in range(ksize):
            cols.append(xp[:, ky:ky + ho * stride:stride,
                           kx:kx + wo * stride:stride, :])
    patches = jnp.concatenate(cols, axis=-1)
    return patches.reshape(n * ho * wo, ksize * ksize * c), ho, wo


def _pad_cast(a, rows, cols, dtype):
    return jnp.pad(a, ((0, rows - a.shape[0]), (0, cols - a.shape[1]))).astype(dtype)


@functools.partial(jax.jit, static_argnames=("stride",))
def subnet_basic_block_forward(x_nchw, params, masks, stride):
    """Forward pass of SubnetBasicBlock.  x: NCHW float32.  Returns NCHW float32."""
    x = jnp.transpose(x_nchw, (0, 2, 3, 1)).astype(jnp.float32)    # NHWC
    n, h, w, c_in = x.shape
    planes = params["w1"].shape[-1]
    cout_p = _round_up(planes, _LANE)

    # Effective (masked) weights, hoisted out of the kernels.
    w1 = (params["w1"] * masks["w1"]).reshape(9 * c_in, planes)
    w2 = (params["w2"] * masks["w2"]).reshape(9 * planes, planes)

    # ---- conv1 (3x3, stride) -> bn1 -> relu (two-pass, tiled over M) ----
    p1, ho, wo = _im2col(x, 3, stride, 1)
    m_real = n * ho * wo
    tile_m = _choose_tile_m(m_real)
    m_pad = _round_up(m_real, tile_m)
    k1_p = _round_up(9 * c_in, _LANE)
    p1 = _pad_cast(p1, m_pad, k1_p, _MATMUL_DTYPE)
    w1 = _pad_cast(w1, k1_p, cout_p, _MATMUL_DTYPE)
    y1, st1 = _conv_pass1(p1, w1, tile_m)
    # out1 feeds the bf16 MXU of conv2, so store it in bf16 directly.
    out1 = _bn_relu(y1, _finalize_stats(st1, m_real), tile_m, _STORE_DTYPE)
    out1 = out1[:m_real, :planes].reshape(n, ho, wo, planes)

    # ---- conv2 (3x3, s=1) -> bn2 -> quant -> (+ shortcut) -> relu ----
    p2, _, _ = _im2col(out1, 3, 1, 1)
    k2_p = _round_up(9 * planes, _LANE)
    p2 = _pad_cast(p2, m_pad, k2_p, _MATMUL_DTYPE)
    w2 = _pad_cast(w2, k2_p, cout_p, _MATMUL_DTYPE)

    if stride != 1 or c_in != planes:
        # Projection shortcut (1x1 conv, stride) + bn3, fused into conv2 passes.
        wsc = (params["w3"] * masks["w3"]).reshape(c_in, planes)
        ksc_p = _round_up(c_in, _LANE)
        psc = x[:, ::stride, ::stride, :].reshape(m_real, c_in)
        psc = _pad_cast(psc, m_pad, ksc_p, _MATMUL_DTYPE)
        wsc = _pad_cast(wsc, ksc_p, cout_p, _MATMUL_DTYPE)
        y2, ysc, st2, stsc = _conv2_shortcut_pass1(p2, w2, psc, wsc, tile_m)
        out = _bn_add_bn_relu(y2, _finalize_stats(st2, m_real),
                              ysc, _finalize_stats(stsc, m_real), tile_m)
    else:
        # Identity shortcut: residual is the raw input x (kept f32 for exactness).
        y2, st2 = _conv_pass1(p2, w2, tile_m)
        res = _pad_cast(x.reshape(m_real, c_in), m_pad, cout_p, jnp.float32)
        out = _bn_add_res_relu(y2, _finalize_stats(st2, m_real), res, tile_m)

    out = out[:m_real, :planes].reshape(n, ho, wo, planes)
    return jnp.transpose(out, (0, 3, 1, 2))                        # back to NCHW


# ------------------------- pure-JAX reference check ------------------------- #

def _reference_forward(x, params, masks, stride):
    def conv(a, w_hwio, s, pad):
        return jax.lax.conv_general_dilated(
            a, w_hwio, (s, s), [(pad, pad), (pad, pad)],
            dimension_numbers=("NCHW", "HWIO", "NCHW"))

    def bn(y):
        mu = y.mean(axis=(0, 2, 3), keepdims=True)
        var = ((y - mu) ** 2).mean(axis=(0, 2, 3), keepdims=True)
        return (y - mu) * jax.lax.rsqrt(var + _EPS)

    out = jax.nn.relu(bn(conv(x, params["w1"] * masks["w1"], stride, 1)))
    out = bn(conv(out, params["w2"] * masks["w2"], 1, 1))
    # quant2 treated as identity.
    if stride != 1 or x.shape[1] != params["w1"].shape[-1]:
        out = out + bn(conv(x, params["w3"] * masks["w3"], stride, 0))
    else:
        out = out + x
    return jax.nn.relu(out)


# --------------------------------- main ------------------------------------ #

if __name__ == "__main__":
    keys = jax.random.split(jax.random.PRNGKey(0), 12)
    (k_x, k_w1, k_w2, k_w3, k_m1, k_m2, k_m3,
     k_x2, k_w1b, k_w2b, k_m1b, k_m2b) = keys

    # ---- case 1: downsampling block (projection shortcut), stride 2 ----
    batch, in_planes, height, width = 2, 4, 16, 16
    planes, stride, sparsity = 8, 2, 0.5

    x = jax.random.normal(k_x, (batch, in_planes, height, width), jnp.float32)
    params = {
        "w1": 0.1 * jax.random.normal(k_w1, (3, 3, in_planes, planes), jnp.float32),
        "w2": 0.1 * jax.random.normal(k_w2, (3, 3, planes, planes), jnp.float32),
        "w3": 0.1 * jax.random.normal(k_w3, (1, 1, in_planes, planes), jnp.float32),
    }
    masks = {
        "w1": jax.random.bernoulli(k_m1, 1.0 - sparsity,
                                   (3, 3, in_planes, planes)).astype(jnp.float32),
        "w2": jax.random.bernoulli(k_m2, 1.0 - sparsity,
                                   (3, 3, planes, planes)).astype(jnp.float32),
        "w3": jax.random.bernoulli(k_m3, 1.0 - sparsity,
                                   (1, 1, in_planes, planes)).astype(jnp.float32),
    }

    out = jax.block_until_ready(subnet_basic_block_forward(x, params, masks, stride))
    ref = jax.block_until_ready(_reference_forward(x, params, masks, stride))
    assert out.shape == (batch, planes, height // stride, width // stride), out.shape
    assert bool(jnp.all(out >= 0.0))
    assert bool(jnp.allclose(out, ref, atol=8e-2, rtol=8e-2)), \
        float(jnp.max(jnp.abs(out - ref)))

    # ---- case 2: identity-shortcut block (stride 1, in_planes == planes) ----
    x2 = jax.random.normal(k_x2, (2, 8, 16, 16), jnp.float32)
    params2 = {
        "w1": 0.1 * jax.random.normal(k_w1b, (3, 3, 8, 8), jnp.float32),
        "w2": 0.1 * jax.random.normal(k_w2b, (3, 3, 8, 8), jnp.float32),
    }
    masks2 = {
        "w1": jax.random.bernoulli(k_m1b, 0.5, (3, 3, 8, 8)).astype(jnp.float32),
        "w2": jax.random.bernoulli(k_m2b, 0.5, (3, 3, 8, 8)).astype(jnp.float32),
    }
    out2 = jax.block_until_ready(subnet_basic_block_forward(x2, params2, masks2, 1))
    ref2 = jax.block_until_ready(_reference_forward(x2, params2, masks2, 1))
    assert out2.shape == (2, 8, 16, 16), out2.shape
    assert bool(jnp.all(out2 >= 0.0))
    assert bool(jnp.allclose(out2, ref2, atol=8e-2, rtol=8e-2)), \
        float(jnp.max(jnp.abs(out2 - ref2)))

    print("KERNEL_OK")
</pallas_src>

<mosaic_0001>
module attributes {stable_mosaic.version = 11 : i64} {
  func.func @_matmul_stats_kernel(%arg0: i32, %arg1: memref<128x128xbf16, #tpu.memory_space<vmem>>, %arg2: memref<128x128xbf16, #tpu.memory_space<vmem>>, %arg3: memref<128x128xbf16, #tpu.memory_space<vmem>>, %arg4: memref<1x2x128xf32, #tpu.memory_space<vmem>>) attributes {dimension_semantics = [#tpu.dimension_semantics<parallel>], iteration_bounds = array<i64: 1>, scalar_prefetch = 0 : i64, scratch_operands = 0 : i64, tpu.core_type = #tpu.core_type<tc>, window_params = [{transform_indices = @transform_0, window_bounds = array<i64: 128, 128>}, {pipeline_mode = #tpu.pipeline_mode<synchronous>, transform_indices = @transform_1, window_bounds = array<i64: 128, 128>}, {transform_indices = @transform_2, window_bounds = array<i64: 128, 128>}, {transform_indices = @transform_3, window_bounds = array<i64: 1, 2, 128>}]} {
    %c0 = arith.constant 0 : index
    %c0_0 = arith.constant 0 : index
    %0 = vector.load %arg1[%c0, %c0_0] : memref<128x128xbf16, #tpu.memory_space<vmem>>, vector<128x128xbf16>
    %c0_1 = arith.constant 0 : index
    %c0_2 = arith.constant 0 : index
    %1 = vector.load %arg2[%c0_1, %c0_2] : memref<128x128xbf16, #tpu.memory_space<vmem>>, vector<128x128xbf16>
    %cst = arith.constant dense<0.000000e+00> : vector<128x128xf32>
    %2 = tpu.matmul %0, %1, %cst {dimension_numbers = #tpu.dot_dimension_numbers<[1], [0], [0], [1], [0, 0, 1, 1], [], []>} : vector<128x128xbf16>, vector<128x128xbf16>, vector<128x128xf32> -> vector<128x128xf32>
    %3 = arith.truncf %2 : vector<128x128xf32> to vector<128x128xbf16>
    %c0_3 = arith.constant 0 : index
    %c0_4 = arith.constant 0 : index
    %4 = vector.load %arg3[%c0_3, %c0_4] : memref<128x128xbf16, #tpu.memory_space<vmem>>, vector<128x128xbf16>
    tpu.vector_store %arg3[%c0_3, %c0_4], %3 {strides = array<i32>} : memref<128x128xbf16, #tpu.memory_space<vmem>>, vector<128x128xbf16>,
    %cst_5 = arith.constant dense<0.000000e+00> : vector<128xf32>
    %5 = vector.multi_reduction <add>, %2, %cst_5 [0] : vector<128x128xf32> to vector<128xf32>
    %6 = vector.shape_cast %5 : vector<128xf32> to vector<1x128xf32>
    %7 = arith.mulf %2, %2 : vector<128x128xf32>
    %cst_6 = arith.constant dense<0.000000e+00> : vector<128xf32>
    %8 = vector.multi_reduction <add>, %7, %cst_6 [0] : vector<128x128xf32> to vector<128xf32>
    %9 = vector.shape_cast %8 : vector<128xf32> to vector<1x128xf32>
    %10 = tpu.concatenate %6, %9 in 0 : vector<1x128xf32>, vector<1x128xf32> -> vector<2x128xf32>
    %c0_7 = arith.constant 0 : index
    %c0_8 = arith.constant 0 : index
    %c0_9 = arith.constant 0 : index
    %11 = vector.load %arg4[%c0_7, %c0_8, %c0_9] : memref<1x2x128xf32, #tpu.memory_space<vmem>>, vector<1x2x128xf32>
    %12 = vector.shape_cast %11 : vector<1x2x128xf32> to vector<2x128xf32>
    %13 = vector.shape_cast %10 : vector<2x128xf32> to vector<1x2x128xf32>
    tpu.vector_store %arg4[%c0_7, %c0_8, %c0_9], %13 {strides = array<i32>} : memref<1x2x128xf32, #tpu.memory_space<vmem>>, vector<1x2x128xf32>,
    return
  }
  func.func @transform_0(%arg0: i32) -> (i32, i32) {
    %c0_i32 = arith.constant 0 : i32
    %c0_i32_0 = arith.constant 0 : i32
    return %arg0, %c0_i32 : i32, i32
  }
  func.func @transform_1(%arg0: i32) -> (i32, i32) {
    %c0_i32 = arith.constant 0 : i32
    %c0_i32_0 = arith.constant 0 : i32
    %c0_i32_1 = arith.constant 0 : i32
    return %c0_i32, %c0_i32_0 : i32, i32
  }
  func.func @transform_2(%arg0: i32) -> (i32, i32) {
    %c0_i32 = arith.constant 0 : i32
    %c0_i32_0 = arith.constant 0 : i32
    return %arg0, %c0_i32 : i32, i32
  }
  func.func @transform_3(%arg0: i32) -> (i32, i32, i32) {
    %c0_i32 = arith.constant 0 : i32
    %c0_i32_0 = arith.constant 0 : i32
    %c0_i32_1 = arith.constant 0 : i32
    return %arg0, %c0_i32, %c0_i32_0 : i32, i32, i32
  }
}

module attributes {stable_mosaic.version = 11 : i64} {
  func.func @_bn_relu_kernel(%arg0: i32, %arg1: memref<128x128xbf16, #tpu.memory_space<vmem>>, %arg2: memref<2x128xf32, #tpu.memory_space<vmem>>, %arg3: memref<128x128xbf16, #tpu.memory_space<vmem>>) attributes {dimension_semantics = [#tpu.dimension_semantics<parallel>], iteration_bounds = array<i64: 1>, scalar_prefetch = 0 : i64, scratch_operands = 0 : i64, tpu.core_type = #tpu.core_type<tc>, window_params = [{transform_indices = @transform_0, window_bounds = array<i64: 128, 128>}, {pipeline_mode = #tpu.pipeline_mode<synchronous>, transform_indices = @transform_1, window_bounds = array<i64: 2, 128>}, {transform_indices = @transform_2, window_bounds = array<i64: 128, 128>}]} {
    %c0 = arith.constant 0 : index
    %c0_0 = arith.constant 0 : index
    %0 = vector.load %arg2[%c0, %c0_0] : memref<2x128xf32, #tpu.memory_space<vmem>>, vector<1x128xf32>
    %c1 = arith.constant 1 : index
    %c0_1 = arith.constant 0 : index
    %1 = vector.load %arg2[%c1, %c0_1] : memref<2x128xf32, #tpu.memory_space<vmem>>, vector<1x128xf32>
    %c0_2 = arith.constant 0 : index
    %c0_3 = arith.constant 0 : index
    %2 = vector.load %arg1[%c0_2, %c0_3] : memref<128x128xbf16, #tpu.memory_space<vmem>>, vector<128x128xbf16>
    %3 = arith.extf %2 : vector<128x128xbf16> to vector<128x128xf32>
    %4 = vector.broadcast %0 : vector<1x128xf32> to vector<128x128xf32>
    %5 = arith.subf %3, %4 : vector<128x128xf32>
    %6 = vector.broadcast %1 : vector<1x128xf32> to vector<128x128xf32>
    %7 = arith.mulf %5, %6 : vector<128x128xf32>
    %cst = arith.constant 0.000000e+00 : f32
    %8 = vector.broadcast %cst : f32 to vector<128x128xf32>
    %9 = arith.maximumf %7, %8 : vector<128x128xf32>
    %10 = arith.truncf %9 : vector<128x128xf32> to vector<128x128xbf16>
    %c0_4 = arith.constant 0 : index
    %c0_5 = arith.constant 0 : index
    %11 = vector.load %arg3[%c0_4, %c0_5] : memref<128x128xbf16, #tpu.memory_space<vmem>>, vector<128x128xbf16>
    tpu.vector_store %arg3[%c0_4, %c0_5], %10 {strides = array<i32>} : memref<128x128xbf16, #tpu.memory_space<vmem>>, vector<128x128xbf16>,
    return
  }
  func.func @transform_0(%arg0: i32) -> (i32, i32) {
    %c0_i32 = arith.constant 0 : i32
    %c0_i32_0 = arith.constant 0 : i32
    return %arg0, %c0_i32 : i32, i32
  }
  func.func @transform_1(%arg0: i32) -> (i32, i32) {
    %c0_i32 = arith.constant 0 : i32
    %c0_i32_0 = arith.constant 0 : i32
    %c0_i32_1 = arith.constant 0 : i32
    return %c0_i32, %c0_i32_0 : i32, i32
  }
  func.func @transform_2(%arg0: i32) -> (i32, i32) {
    %c0_i32 = arith.constant 0 : i32
    %c0_i32_0 = arith.constant 0 : i32
    return %arg0, %c0_i32 : i32, i32
  }
}

module attributes {stable_mosaic.version = 11 : i64} {
  func.func @_matmul2_stats_kernel(%arg0: i32, %arg1: memref<128x128xbf16, #tpu.memory_space<vmem>>, %arg2: memref<128x128xbf16, #tpu.memory_space<vmem>>, %arg3: memref<128x128xbf16, #tpu.memory_space<vmem>>, %arg4: memref<128x128xbf16, #tpu.memory_space<vmem>>, %arg5: memref<128x128xbf16, #tpu.memory_space<vmem>>, %arg6: memref<128x128xbf16, #tpu.memory_space<vmem>>, %arg7: memref<1x2x128xf32, #tpu.memory_space<vmem>>, %arg8: memref<1x2x128xf32, #tpu.memory_space<vmem>>) attributes {dimension_semantics = [#tpu.dimension_semantics<parallel>], iteration_bounds = array<i64: 1>, scalar_prefetch = 0 : i64, scratch_operands = 0 : i64, tpu.core_type = #tpu.core_type<tc>, window_params = [{transform_indices = @transform_0, window_bounds = array<i64: 128, 128>}, {pipeline_mode = #tpu.pipeline_mode<synchronous>, transform_indices = @transform_1, window_bounds = array<i64: 128, 128>}, {transform_indices = @transform_2, window_bounds = array<i64: 128, 128>}, {pipeline_mode = #tpu.pipeline_mode<synchronous>, transform_indices = @transform_3, window_bounds = array<i64: 128, 128>}, {transform_indices = @transform_4, window_bounds = array<i64: 128, 128>}, {transform_indices = @transform_5, window_bounds = array<i64: 128, 128>}, {transform_indices = @transform_6, window_bounds = array<i64: 1, 2, 128>}, {transform_indices = @transform_7, window_bounds = array<i64: 1, 2, 128>}]} {
    %c0 = arith.constant 0 : index
    %c0_0 = arith.constant 0 : index
    %0 = vector.load %arg1[%c0, %c0_0] : memref<128x128xbf16, #tpu.memory_space<vmem>>, vector<128x128xbf16>
    %c0_1 = arith.constant 0 : index
    %c0_2 = arith.constant 0 : index
    %1 = vector.load %arg2[%c0_1, %c0_2] : memref<128x128xbf16, #tpu.memory_space<vmem>>, vector<128x128xbf16>
    %cst = arith.constant dense<0.000000e+00> : vector<128x128xf32>
    %2 = tpu.matmul %0, %1, %cst {dimension_numbers = #tpu.dot_dimension_numbers<[1], [0], [0], [1], [0, 0, 1, 1], [], []>} : vector<128x128xbf16>, vector<128x128xbf16>, vector<128x128xf32> -> vector<128x128xf32>
    %c0_3 = arith.constant 0 : index
    %c0_4 = arith.constant 0 : index
    %3 = vector.load %arg3[%c0_3, %c0_4] : memref<128x128xbf16, #tpu.memory_space<vmem>>, vector<128x128xbf16>
    %c0_5 = arith.constant 0 : index
    %c0_6 = arith.constant 0 : index
    %4 = vector.load %arg4[%c0_5, %c0_6] : memref<128x128xbf16, #tpu.memory_space<vmem>>, vector<128x128xbf16>
    %cst_7 = arith.constant dense<0.000000e+00> : vector<128x128xf32>
    %5 = tpu.matmul %3, %4, %cst_7 {dimension_numbers = #tpu.dot_dimension_numbers<[1], [0], [0], [1], [0, 0, 1, 1], [], []>} : vector<128x128xbf16>, vector<128x128xbf16>, vector<128x128xf32> -> vector<128x128xf32>
    %6 = arith.truncf %2 : vector<128x128xf32> to vector<128x128xbf16>
    %c0_8 = arith.constant 0 : index
    %c0_9 = arith.constant 0 : index
    %7 = vector.load %arg5[%c0_8, %c0_9] : memref<128x128xbf16, #tpu.memory_space<vmem>>, vector<128x128xbf16>
    tpu.vector_store %arg5[%c0_8, %c0_9], %6 {strides = array<i32>} : memref<128x128xbf16, #tpu.memory_space<vmem>>, vector<128x128xbf16>,
    %8 = arith.truncf %5 : vector<128x128xf32> to vector<128x128xbf16>
    %c0_10 = arith.constant 0 : index
    %c0_11 = arith.constant 0 : index
    %9 = vector.load %arg6[%c0_10, %c0_11] : memref<128x128xbf16, #tpu.memory_space<vmem>>, vector<128x128xbf16>
    tpu.vector_store %arg6[%c0_10, %c0_11], %8 {strides = array<i32>} : memref<128x128xbf16, #tpu.memory_space<vmem>>, vector<128x128xbf16>,
    %cst_12 = arith.constant dense<0.000000e+00> : vector<128xf32>
    %10 = vector.multi_reduction <add>, %2, %cst_12 [0] : vector<128x128xf32> to vector<128xf32>
    %11 = vector.shape_cast %10 : vector<128xf32> to vector<1x128xf32>
    %12 = arith.mulf %2, %2 : vector<128x128xf32>
    %cst_13 = arith.constant dense<0.000000e+00> : vector<128xf32>
    %13 = vector.multi_reduction <add>, %12, %cst_13 [0] : vector<128x128xf32> to vector<128xf32>
    %14 = vector.shape_cast %13 : vector<128xf32> to vector<1x128xf32>
    %15 = tpu.concatenate %11, %14 in 0 : vector<1x128xf32>, vector<1x128xf32> -> vector<2x128xf32>
    %c0_14 = arith.constant 0 : index
    %c0_15 = arith.constant 0 : index
    %c0_16 = arith.constant 0 : index
    %16 = vector.load %arg7[%c0_14, %c0_15, %c0_16] : memref<1x2x128xf32, #tpu.memory_space<vmem>>, vector<1x2x128xf32>
    %17 = vector.shape_cast %16 : vector<1x2x128xf32> to vector<2x128xf32>
    %18 = vector.shape_cast %15 : vector<2x128xf32> to vector<1x2x128xf32>
    tpu.vector_store %arg7[%c0_14, %c0_15, %c0_16], %18 {strides = array<i32>} : memref<1x2x128xf32, #tpu.memory_space<vmem>>, vector<1x2x128xf32>,
    %cst_17 = arith.constant dense<0.000000e+00> : vector<128xf32>
    %19 = vector.multi_reduction <add>, %5, %cst_17 [0] : vector<128x128xf32> to vector<128xf32>
    %20 = vector.shape_cast %19 : vector<128xf32> to vector<1x128xf32>
    %21 = arith.mulf %5, %5 : vector<128x128xf32>
    %cst_18 = arith.constant dense<0.000000e+00> : vector<128xf32>
    %22 = vector.multi_reduction <add>, %21, %cst_18 [0] : vector<128x128xf32> to vector<128xf32>
    %23 = vector.shape_cast %22 : vector<128xf32> to vector<1x128xf32>
    %24 = tpu.concatenate %20, %23 in 0 : vector<1x128xf32>, vector<1x128xf32> -> vector<2x128xf32>
    %c0_19 = arith.constant 0 : index
    %c0_20 = arith.constant 0 : index
    %c0_21 = arith.constant 0 : index
    %25 = vector.load %arg8[%c0_19, %c0_20, %c0_21] : memref<1x2x128xf32, #tpu.memory_space<vmem>>, vector<1x2x128xf32>
    %26 = vector.shape_cast %25 : vector<1x2x128xf32> to vector<2x128xf32>
    %27 = vector.shape_cast %24 : vector<2x128xf32> to vector<1x2x128xf32>
    tpu.vector_store %arg8[%c0_19, %c0_20, %c0_21], %27 {strides = array<i32>} : memref<1x2x128xf32, #tpu.memory_space<vmem>>, vector<1x2x128xf32>,
    return
  }
  func.func @transform_0(%arg0: i32) -> (i32, i32) {
    %c0_i32 = arith.constant 0 : i32
    %c0_i32_0 = arith.constant 0 : i32
    return %arg0, %c0_i32 : i32, i32
  }
  func.func @transform_1(%arg0: i32) -> (i32, i32) {
    %c0_i32 = arith.constant 0 : i32
    %c0_i32_0 = arith.constant 0 : i32
    %c0_i32_1 = arith.constant 0 : i32
    return %c0_i32, %c0_i32_0 : i32, i32
  }
  func.func @transform_2(%arg0: i32) -> (i32, i32) {
    %c0_i32 = arith.constant 0 : i32
    %c0_i32_0 = arith.constant 0 : i32
    return %arg0, %c0_i32 : i32, i32
  }
  func.func @transform_3(%arg0: i32) -> (i32, i32) {
    %c0_i32 = arith.constant 0 : i32
    %c0_i32_0 = arith.constant 0 : i32
    %c0_i32_1 = arith.constant 0 : i32
    return %c0_i32, %c0_i32_0 : i32, i32
  }
  func.func @transform_4(%arg0: i32) -> (i32, i32) {
    %c0_i32 = arith.constant 0 : i32
    %c0_i32_0 = arith.constant 0 : i32
    return %arg0, %c0_i32 : i32, i32
  }
  func.func @transform_5(%arg0: i32) -> (i32, i32) {
    %c0_i32 = arith.constant 0 : i32
    %c0_i32_0 = arith.constant 0 : i32
    return %arg0, %c0_i32 : i32, i32
  }
  func.func @transform_6(%arg0: i32) -> (i32, i32, i32) {
    %c0_i32 = arith.constant 0 : i32
    %c0_i32_0 = arith.constant 0 : i32
    %c0_i32_1 = arith.constant 0 : i32
    return %arg0, %c0_i32, %c0_i32_0 : i32, i32, i32
  }
  func.func @transform_7(%arg0: i32) -> (i32, i32, i32) {
    %c0_i32 = arith.constant 0 : i32
    %c0_i32_0 = arith.constant 0 : i32
    %c0_i32_1 = arith.constant 0 : i32
    return %arg0, %c0_i32, %c0_i32_0 : i32, i32, i32
  }
}

module attributes {stable_mosaic.version = 11 : i64} {
  func.func @_bn_add_bn_relu_kernel(%arg0: i32, %arg1: memref<128x128xbf16, #tpu.memory_space<vmem>>, %arg2: memref<2x128xf32, #tpu.memory_space<vmem>>, %arg3: memref<128x128xbf16, #tpu.memory_space<vmem>>, %arg4: memref<2x128xf32, #tpu.memory_space<vmem>>, %arg5: memref<128x128xf32, #tpu.memory_space<vmem>>) attributes {dimension_semantics = [#tpu.dimension_semantics<parallel>], iteration_bounds = array<i64: 1>, scalar_prefetch = 0 : i64, scratch_operands = 0 : i64, tpu.core_type = #tpu.core_type<tc>, window_params = [{transform_indices = @transform_0, window_bounds = array<i64: 128, 128>}, {pipeline_mode = #tpu.pipeline_mode<synchronous>, transform_indices = @transform_1, window_bounds = array<i64: 2, 128>}, {transform_indices = @transform_2, window_bounds = array<i64: 128, 128>}, {pipeline_mode = #tpu.pipeline_mode<synchronous>, transform_indices = @transform_3, window_bounds = array<i64: 2, 128>}, {transform_indices = @transform_4, window_bounds = array<i64: 128, 128>}]} {
    %c0 = arith.constant 0 : index
    %c0_0 = arith.constant 0 : index
    %0 = vector.load %arg2[%c0, %c0_0] : memref<2x128xf32, #tpu.memory_space<vmem>>, vector<1x128xf32>
    %c1 = arith.constant 1 : index
    %c0_1 = arith.constant 0 : index
    %1 = vector.load %arg2[%c1, %c0_1] : memref<2x128xf32, #tpu.memory_space<vmem>>, vector<1x128xf32>
    %c0_2 = arith.constant 0 : index
    %c0_3 = arith.constant 0 : index
    %2 = vector.load %arg4[%c0_2, %c0_3] : memref<2x128xf32, #tpu.memory_space<vmem>>, vector<1x128xf32>
    %c1_4 = arith.constant 1 : index
    %c0_5 = arith.constant 0 : index
    %3 = vector.load %arg4[%c1_4, %c0_5] : memref<2x128xf32, #tpu.memory_space<vmem>>, vector<1x128xf32>
    %c0_6 = arith.constant 0 : index
    %c0_7 = arith.constant 0 : index
    %4 = vector.load %arg1[%c0_6, %c0_7] : memref<128x128xbf16, #tpu.memory_space<vmem>>, vector<128x128xbf16>
    %5 = arith.extf %4 : vector<128x128xbf16> to vector<128x128xf32>
    %6 = vector.broadcast %0 : vector<1x128xf32> to vector<128x128xf32>
    %7 = arith.subf %5, %6 : vector<128x128xf32>
    %8 = vector.broadcast %1 : vector<1x128xf32> to vector<128x128xf32>
    %9 = arith.mulf %7, %8 : vector<128x128xf32>
    %c0_8 = arith.constant 0 : index
    %c0_9 = arith.constant 0 : index
    %10 = vector.load %arg3[%c0_8, %c0_9] : memref<128x128xbf16, #tpu.memory_space<vmem>>, vector<128x128xbf16>
    %11 = arith.extf %10 : vector<128x128xbf16> to vector<128x128xf32>
    %12 = vector.broadcast %2 : vector<1x128xf32> to vector<128x128xf32>
    %13 = arith.subf %11, %12 : vector<128x128xf32>
    %14 = vector.broadcast %3 : vector<1x128xf32> to vector<128x128xf32>
    %15 = arith.mulf %13, %14 : vector<128x128xf32>
    %16 = arith.addf %9, %15 : vector<128x128xf32>
    %cst = arith.constant 0.000000e+00 : f32
    %17 = vector.broadcast %cst : f32 to vector<128x128xf32>
    %18 = arith.maximumf %16, %17 : vector<128x128xf32>
    %c0_10 = arith.constant 0 : index
    %c0_11 = arith.constant 0 : index
    %19 = vector.load %arg5[%c0_10, %c0_11] : memref<128x128xf32, #tpu.memory_space<vmem>>, vector<128x128xf32>
    tpu.vector_store %arg5[%c0_10, %c0_11], %18 {strides = array<i32>} : memref<128x128xf32, #tpu.memory_space<vmem>>, vector<128x128xf32>,
    return
  }
  func.func @transform_0(%arg0: i32) -> (i32, i32) {
    %c0_i32 = arith.constant 0 : i32
    %c0_i32_0 = arith.constant 0 : i32
    return %arg0, %c0_i32 : i32, i32
  }
  func.func @transform_1(%arg0: i32) -> (i32, i32) {
    %c0_i32 = arith.constant 0 : i32
    %c0_i32_0 = arith.constant 0 : i32
    %c0_i32_1 = arith.constant 0 : i32
    return %c0_i32, %c0_i32_0 : i32, i32
  }
  func.func @transform_2(%arg0: i32) -> (i32, i32) {
    %c0_i32 = arith.constant 0 : i32
    %c0_i32_0 = arith.constant 0 : i32
    return %arg0, %c0_i32 : i32, i32
  }
  func.func @transform_3(%arg0: i32) -> (i32, i32) {
    %c0_i32 = arith.constant 0 : i32
    %c0_i32_0 = arith.constant 0 : i32
    %c0_i32_1 = arith.constant 0 : i32
    return %c0_i32, %c0_i32_0 : i32, i32
  }
  func.func @transform_4(%arg0: i32) -> (i32, i32) {
    %c0_i32 = arith.constant 0 : i32
    %c0_i32_0 = arith.constant 0 : i32
    return %arg0, %c0_i32 : i32, i32
  }
}

</mosaic_0001>

<llo_original>
// kernel: subnet_basic_block_forward.5
$region0: #{subnet_basic_block_forward.5}
  #allocation0 [shape = 'u32[]', space=smem, size = 0x4, offset = 0x4, fixed_abs, tag = 'smem constant byte address 0x4 - core index']
  #allocation1 [shape = 'u32[144,128]{1,0:T(1,128)}', space=vmem, size = 0x12000, scoped, tag = 'internal scratch']
  %s0 = inlined_call_operand.vmem [shape: bf16[128,128], index: 0, kind: input, shape index: {}]
  %s1 = inlined_call_operand.vmem [shape: f32[2,128], index: 1, kind: input, shape index: {}]
  %s2 = inlined_call_operand.vmem [shape: bf16[128,128], index: 2, kind: output, shape index: {}]
  %s3 = sld [smem:[#allocation0]]
  $region18: #{subnet_basic_block_forward.5} parent=0
    _
  %s5 = ssub.s32 1, %s3
  %s6 = scalar_select 0, %s5, %s3
  // Predicated region
  $region2: #{subnet_basic_block_forward.5} parent=0 // pred_check
    _
  $region3: #{subnet_basic_block_forward.5} parent=0 // pred_check_branch
    %8 = sbr.rel (0) target = $region5
  $region4: #{subnet_basic_block_forward.5} parent=0 // pred_region
    _
  $region5: #{subnet_basic_block_forward.5} parent=0 // pred_fallthru
    _
  // Predicated region
  $region6: #{subnet_basic_block_forward.5} parent=0 // pred_check
    _
  $region7: #{subnet_basic_block_forward.5} parent=0 // pred_check_branch
    %10 = sbr.rel (0) target = $region9
  $region8: #{subnet_basic_block_forward.5} parent=0 // pred_region
    _
  $region9: #{subnet_basic_block_forward.5} parent=0 // pred_fallthru
    _
  %v11 = vld [vmem:[%s1] sm:$0x1]
  %v12 = vld [vmem:[%s1 + $0x1] sm:$0x1]
  %v13 = vld [vmem:[%s0] sm:$0xf]
  %v14 = vld [vmem:[%s0 + $0x4] sm:$0xf]
  %v15 = vld [vmem:[%s0 + $0x8] sm:$0xf]
  %v16 = vld [vmem:[%s0 + $0xc] sm:$0xf]
  %v17 = vld [vmem:[%s0 + $0x10] sm:$0xf]
  %v18 = vld [vmem:[%s0 + $0x14] sm:$0xf]
  %v19 = vld [vmem:[%s0 + $0x18] sm:$0xf]
  %v20 = vld [vmem:[%s0 + $0x1c] sm:$0xf]
  %v21 = vld [vmem:[%s0 + $0x20] sm:$0xf]
  %v22 = vld [vmem:[%s0 + $0x24] sm:$0xf]
  %v23 = vld [vmem:[%s0 + $0x28] sm:$0xf]
  %v24 = vld [vmem:[%s0 + $0x2c] sm:$0xf]
  %v25 = vld [vmem:[%s0 + $0x30] sm:$0xf]
  %v26 = vld [vmem:[%s0 + $0x34] sm:$0xf]
  %v27 = vld [vmem:[%s0 + $0x38] sm:$0xf]
  %v28 = vld [vmem:[%s0 + $0x3c] sm:$0xf]
  %v29 = vunpack.c.l.bf16 %v13
  %v30 = vunpack.c.l.bf16 %v14
  %v31 = vunpack.c.l.bf16 %v15
  %v32 = vunpack.c.l.bf16 %v16
  %v33 = vunpack.c.l.bf16 %v17
  %v34 = vunpack.c.l.bf16 %v18
  %v35 = vunpack.c.l.bf16 %v19
  %v36 = vunpack.c.l.bf16 %v20
  %v37 = vunpack.c.l.bf16 %v21
  %v38 = vunpack.c.l.bf16 %v22
  %v39 = vunpack.c.l.bf16 %v23
  %v40 = vunpack.c.l.bf16 %v24
  %v41 = vunpack.c.l.bf16 %v25
  %v42 = vunpack.c.l.bf16 %v26
  %v43 = vunpack.c.l.bf16 %v27
  %v44 = vunpack.c.l.bf16 %v28
  %v45 = vlaneseq
  %v46 = vshrl.u32 %v45, 7
  %v47 = vsub.s32 0, %v46
  %v48 = vrot.slane %v11, %v47
  %v49 = vsub.f32 %v29, %v48
  %v50 = vsub.f32 %v30, %v48
  %v51 = vsub.f32 %v31, %v48
  %v52 = vsub.f32 %v32, %v48
  %v53 = vsub.f32 %v33, %v48
  %v54 = vsub.f32 %v34, %v48
  %v55 = vsub.f32 %v35, %v48
  %v56 = vsub.f32 %v36, %v48
  %v57 = vsub.f32 %v37, %v48
  %v58 = vsub.f32 %v38, %v48
  %v59 = vsub.f32 %v39, %v48
  %v60 = vsub.f32 %v40, %v48
  %v61 = vsub.f32 %v41, %v48
  %v62 = vsub.f32 %v42, %v48
  %v63 = vsub.f32 %v43, %v48
  %v64 = vsub.f32 %v44, %v48
  %v65 = vlaneseq
  %v66 = vshrl.u32 %v65, 7
  %v67 = vsub.s32 0, %v66
  %v68 = vrot.slane %v12, %v67
  %v69 = vmul.f32 %v49, %v68
  %v70 = vmul.f32 %v50, %v68
  %v71 = vmul.f32 %v51, %v68
  %v72 = vmul.f32 %v52, %v68
  %v73 = vmul.f32 %v53, %v68
  %v74 = vmul.f32 %v54, %v68
  %v75 = vmul.f32 %v55, %v68
  %v76 = vmul.f32 %v56, %v68
  %v77 = vmul.f32 %v57, %v68
  %v78 = vmul.f32 %v58, %v68
  %v79 = vmul.f32 %v59, %v68
  %v80 = vmul.f32 %v60, %v68
  %v81 = vmul.f32 %v61, %v68
  %v82 = vmul.f32 %v62, %v68
  %v83 = vmul.f32 %v63, %v68
  %v84 = vmul.f32 %v64, %v68
  %v85 = vmax.f32 %v69, 0.0
  %v86 = vmax.f32 %v70, 0.0
  %v87 = vmax.f32 %v71, 0.0
  %v88 = vmax.f32 %v72, 0.0
  %v89 = vmax.f32 %v73, 0.0
  %v90 = vmax.f32 %v74, 0.0
  %v91 = vmax.f32 %v75, 0.0
  %v92 = vmax.f32 %v76, 0.0
  %v93 = vmax.f32 %v77, 0.0
  %v94 = vmax.f32 %v78, 0.0
  %v95 = vmax.f32 %v79, 0.0
  %v96 = vmax.f32 %v80, 0.0
  %v97 = vmax.f32 %v81, 0.0
  %v98 = vmax.f32 %v82, 0.0
  %v99 = vmax.f32 %v83, 0.0
  %v100 = vmax.f32 %v84, 0.0
  %v101 = vpack.c.bf16 %v86, %v85
  %v102 = vpack.c.bf16 %v88, %v87
  %v103 = vpack.c.bf16 %v90, %v89
  %v104 = vpack.c.bf16 %v92, %v91
  %v105 = vpack.c.bf16 %v94, %v93
  %v106 = vpack.c.bf16 %v96, %v95
  %v107 = vpack.c.bf16 %v98, %v97
  %v108 = vpack.c.bf16 %v100, %v99
  %v117 = vunpack.c.l.b16 %v101
  %v118 = vunpack.c.h.b16 %v101
  %v119 = vunpack.c.l.b16 %v102
  %v120 = vunpack.c.h.b16 %v102
  %v121 = vunpack.c.l.b16 %v103
  %v122 = vunpack.c.h.b16 %v103
  %v123 = vunpack.c.l.b16 %v104
  %v124 = vunpack.c.h.b16 %v104
  %v125 = vunpack.c.l.b16 %v105
  %v126 = vunpack.c.h.b16 %v105
  %v127 = vunpack.c.l.b16 %v106
  %v128 = vunpack.c.h.b16 %v106
  %v129 = vunpack.c.l.b16 %v107
  %v130 = vunpack.c.h.b16 %v107
  %v131 = vunpack.c.l.b16 %v108
  %v132 = vunpack.c.h.b16 %v108
  %v133 = vpack.c.b16 %v117, %v117
  %v134 = vpack.c.b16 %v118, %v118
  %v135 = vpack.c.b16 %v119, %v119
  %v136 = vpack.c.b16 %v120, %v120
  %v137 = vpack.c.b16 %v121, %v121
  %v138 = vpack.c.b16 %v122, %v122
  %v139 = vpack.c.b16 %v123, %v123
  %v140 = vpack.c.b16 %v124, %v124
  %v141 = vpack.c.b16 %v125, %v125
  %v142 = vpack.c.b16 %v126, %v126
  %v143 = vpack.c.b16 %v127, %v127
  %v144 = vpack.c.b16 %v128, %v128
  %v145 = vpack.c.b16 %v129, %v129
  %v146 = vpack.c.b16 %v130, %v130
  %v147 = vpack.c.b16 %v131, %v131
  %v148 = vpack.c.b16 %v132, %v132
  %165 = vst [vmem:[%s2] sm:$0xf] %v133
  %166 = vst [vmem:[%s2 + $0x4] sm:$0xf] %v134
  %167 = vst [vmem:[%s2 + $0x8] sm:$0xf] %v135
  %168 = vst [vmem:[%s2 + $0xc] sm:$0xf] %v136
  %169 = vst [vmem:[%s2 + $0x10] sm:$0xf] %v137
  %170 = vst [vmem:[%s2 + $0x14] sm:$0xf] %v138
  %171 = vst [vmem:[%s2 + $0x18] sm:$0xf] %v139
  %172 = vst [vmem:[%s2 + $0x1c] sm:$0xf] %v140
  %173 = vst [vmem:[%s2 + $0x20] sm:$0xf] %v141
  %174 = vst [vmem:[%s2 + $0x24] sm:$0xf] %v142
  %175 = vst [vmem:[%s2 + $0x28] sm:$0xf] %v143
  %176 = vst [vmem:[%s2 + $0x2c] sm:$0xf] %v144
  %177 = vst [vmem:[%s2 + $0x30] sm:$0xf] %v145
  %178 = vst [vmem:[%s2 + $0x34] sm:$0xf] %v146
  %179 = vst [vmem:[%s2 + $0x38] sm:$0xf] %v147
  %180 = vst [vmem:[%s2 + $0x3c] sm:$0xf] %v148
  // Predicated region
  $region10: #{subnet_basic_block_forward.5} parent=0 // pred_check
    _
  $region11: #{subnet_basic_block_forward.5} parent=0 // pred_check_branch
    %182 = sbr.rel (0) target = $region13
  $region12: #{subnet_basic_block_forward.5} parent=0 // pred_region
    _
  $region13: #{subnet_basic_block_forward.5} parent=0 // pred_fallthru
    _
  // Predicated region
  $region14: #{subnet_basic_block_forward.5} parent=0 // pred_check
    _
  $region15: #{subnet_basic_block_forward.5} parent=0 // pred_check_branch
    %184 = sbr.rel (0) target = $region17
  $region16: #{subnet_basic_block_forward.5} parent=0 // pred_region
    _
  $region17: #{subnet_basic_block_forward.5} parent=0 // pred_fallthru
    _

// kernel: subnet_basic_block_forward.4
$region0: #{subnet_basic_block_forward.4}
  #allocation0 [shape = 'u32[]', space=smem, size = 0x4, offset = 0x4, fixed_abs, tag = 'smem constant byte address 0x4 - core index']
  #allocation1 [shape = 'u32[144,128]{1,0:T(1,128)}', space=vmem, size = 0x12000, scoped, tag = 'internal scratch']
  %s0 = inlined_call_operand.vmem [shape: bf16[128,128], index: 0, kind: input, shape index: {}]
  %s1 = inlined_call_operand.vmem [shape: bf16[128,128], index: 1, kind: input, shape index: {}]
  %s2 = inlined_call_operand.vmem [shape: bf16[128,128], index: 2, kind: output, shape index: {0}]
  %s3 = inlined_call_operand.vmem [shape: f32[1,2,128], index: 3, kind: output, shape index: {1}]
  %4 = xla_tuple %s2, %s3
  %s5 = sld [smem:[#allocation0]]
  $region26: #{subnet_basic_block_forward.4} parent=0
    _
  %s7 = ssub.s32 1, %s5
  %s8 = scalar_select 0, %s7, %s5
  // Predicated region
  $region2: #{subnet_basic_block_forward.4} parent=0 // pred_check
    _
  $region3: #{subnet_basic_block_forward.4} parent=0 // pred_check_branch
    %10 = sbr.rel (0) target = $region5
  $region4: #{subnet_basic_block_forward.4} parent=0 // pred_region
    _
  $region5: #{subnet_basic_block_forward.4} parent=0 // pred_fallthru
    _
  // Predicated region
  $region6: #{subnet_basic_block_forward.4} parent=0 // pred_check
    _
  $region7: #{subnet_basic_block_forward.4} parent=0 // pred_check_branch
    %12 = sbr.rel (0) target = $region9
  $region8: #{subnet_basic_block_forward.4} parent=0 // pred_region
    _
  $region9: #{subnet_basic_block_forward.4} parent=0 // pred_fallthru
    _
  %v14 = vld [vmem:[%s0] sm:$0xf]
  %v15 = vld [vmem:[%s0 + $0x4] sm:$0xf]
  %v16 = vld [vmem:[%s0 + $0x8] sm:$0xf]
  %v17 = vld [vmem:[%s0 + $0xc] sm:$0xf]
  %v18 = vld [vmem:[%s0 + $0x10] sm:$0xf]
  %v19 = vld [vmem:[%s0 + $0x14] sm:$0xf]
  %v20 = vld [vmem:[%s0 + $0x18] sm:$0xf]
  %v21 = vld [vmem:[%s0 + $0x1c] sm:$0xf]
  %v22 = vld [vmem:[%s0 + $0x20] sm:$0xf]
  %v23 = vld [vmem:[%s0 + $0x24] sm:$0xf]
  %v24 = vld [vmem:[%s0 + $0x28] sm:$0xf]
  %v25 = vld [vmem:[%s0 + $0x2c] sm:$0xf]
  %v26 = vld [vmem:[%s0 + $0x30] sm:$0xf]
  %v27 = vld [vmem:[%s0 + $0x34] sm:$0xf]
  %v28 = vld [vmem:[%s0 + $0x38] sm:$0xf]
  %v29 = vld [vmem:[%s0 + $0x3c] sm:$0xf]
  %v30 = vld [vmem:[%s1] sm:$0xf]
  %v31 = vld [vmem:[%s1 + $0x4] sm:$0xf]
  %v32 = vld [vmem:[%s1 + $0x8] sm:$0xf]
  %v33 = vld [vmem:[%s1 + $0xc] sm:$0xf]
  %v34 = vld [vmem:[%s1 + $0x10] sm:$0xf]
  %v35 = vld [vmem:[%s1 + $0x14] sm:$0xf]
  %v36 = vld [vmem:[%s1 + $0x18] sm:$0xf]
  %v37 = vld [vmem:[%s1 + $0x1c] sm:$0xf]
  %v38 = vld [vmem:[%s1 + $0x20] sm:$0xf]
  %v39 = vld [vmem:[%s1 + $0x24] sm:$0xf]
  %v40 = vld [vmem:[%s1 + $0x28] sm:$0xf]
  %v41 = vld [vmem:[%s1 + $0x2c] sm:$0xf]
  %v42 = vld [vmem:[%s1 + $0x30] sm:$0xf]
  %v43 = vld [vmem:[%s1 + $0x34] sm:$0xf]
  %v44 = vld [vmem:[%s1 + $0x38] sm:$0xf]
  %v45 = vld [vmem:[%s1 + $0x3c] sm:$0xf]
  %v62 = vunpack.c.l.b16 %v14
  %v63 = vunpack.c.l.b16 %v15
  %v64 = vunpack.c.l.b16 %v16
  %v65 = vunpack.c.l.b16 %v17
  %v66 = vunpack.c.l.b16 %v18
  %v67 = vunpack.c.l.b16 %v19
  %v68 = vunpack.c.l.b16 %v20
  %v69 = vunpack.c.l.b16 %v21
  %v70 = vunpack.c.l.b16 %v22
  %v71 = vunpack.c.l.b16 %v23
  %v72 = vunpack.c.l.b16 %v24
  %v73 = vunpack.c.l.b16 %v25
  %v74 = vunpack.c.l.b16 %v26
  %v75 = vunpack.c.l.b16 %v27
  %v76 = vunpack.c.l.b16 %v28
  %v77 = vunpack.c.l.b16 %v29
  %v78 = vpack.c.b16 %v63, %v62
  %v79 = vpack.c.b16 %v65, %v64
  %v80 = vpack.c.b16 %v67, %v66
  %v81 = vpack.c.b16 %v69, %v68
  %v82 = vpack.c.b16 %v71, %v70
  %v83 = vpack.c.b16 %v73, %v72
  %v84 = vpack.c.b16 %v75, %v74
  %v85 = vpack.c.b16 %v77, %v76
  %v110 = vunpack.c.l.b16 %v30
  %v111 = vunpack.c.l.b16 %v31
  %v112 = vunpack.c.l.b16 %v32
  %v113 = vunpack.c.l.b16 %v33
  %v114 = vunpack.c.l.b16 %v34
  %v115 = vunpack.c.l.b16 %v35
  %v116 = vunpack.c.l.b16 %v36
  %v117 = vunpack.c.l.b16 %v37
  %v118 = vunpack.c.l.b16 %v38
  %v119 = vunpack.c.l.b16 %v39
  %v120 = vunpack.c.l.b16 %v40
  %v121 = vunpack.c.l.b16 %v41
  %v122 = vunpack.c.l.b16 %v42
  %v123 = vunpack.c.l.b16 %v43
  %v124 = vunpack.c.l.b16 %v44
  %v125 = vunpack.c.l.b16 %v45
  %v126 = vpack.c.b16 %v111, %v110
  %v127 = vpack.c.b16 %v113, %v112
  %v128 = vpack.c.b16 %v115, %v114
  %v129 = vpack.c.b16 %v117, %v116
  %v130 = vpack.c.b16 %v119, %v118
  %v131 = vpack.c.b16 %v121, %v120
  %v132 = vpack.c.b16 %v123, %v122
  %v133 = vpack.c.b16 %v125, %v124
  %142 = vmatprep.subr.bf16.mxu0 0
  %143 = vmatpush1.bf16.msra.mxu0 %v133
  %144 = vmatprep.subr.bf16.mxu0 0
  %145 = vmatpush1.bf16.msra.mxu0 %v132
  %146 = vmatprep.subr.bf16.mxu0 0
  %147 = vmatpush1.bf16.msra.mxu0 %v131
  %148 = vmatprep.subr.bf16.mxu0 0
  %149 = vmatpush1.bf16.msra.mxu0 %v130
  %150 = vmatprep.subr.bf16.mxu0 0
  %151 = vmatpush1.bf16.msra.mxu0 %v129
  %152 = vmatprep.subr.bf16.mxu0 0
  %153 = vmatpush1.bf16.msra.mxu0 %v128
  %154 = vmatprep.subr.bf16.mxu0 0
  %155 = vmatpush1.bf16.msra.mxu0 %v127
  %156 = vmatprep.subr.bf16.mxu0 0
  %157 = vmatpush1.bf16.msra.mxu0 %v126
  %158 = vmatprep.subr.bf16.mxu0 0
  %159 = vmatpush2.bf16.msra.mxu0 0
  %160 = vmatprep.subr.bf16.mxu0 0
  %161 = vmatpush2.bf16.msra.mxu0 0
  %162 = vmatprep.subr.bf16.mxu0 0
  %163 = vmatpush2.bf16.msra.mxu0 0
  %164 = vmatprep.subr.bf16.mxu0 0
  %165 = vmatpush2.bf16.msra.mxu0 0
  %166 = vmatprep.subr.bf16.mxu0 0
  %167 = vmatpush2.bf16.msra.mxu0 0
  %168 = vmatprep.subr.bf16.mxu0 0
  %169 = vmatpush2.bf16.msra.mxu0 0
  %170 = vmatprep.subr.bf16.mxu0 0
  %171 = vmatpush2.bf16.msra.mxu0 0
  %172 = vmatprep.subr.bf16.mxu0 0
  %173 = vmatpush2.bf16.msra.mxu0 0
  %174 = vmatprep.mubr.bf16.mxu0 0
  %175 = vmatmul.mubr.bf16.gmra.mxu0 %v78
  %v176 = vpop.f32.mrf.mxu0
  %v177 = vadd.f32 0.0, %v176
  %v178 = vpop.f32.mrf.mxu0
  %v179 = vpop.f32.mrf.mxu0
  %v180 = vadd.f32 0.0, %v179
  %v181 = vpop.f32.mrf.mxu0
  %182 = vmatprep.mubr.bf16.mxu0 0
  %183 = vmatmul.mubr.bf16.gmra.mxu0 %v79
  %v184 = vpop.f32.mrf.mxu0
  %v185 = vadd.f32 0.0, %v184
  %v186 = vpop.f32.mrf.mxu0
  %v187 = vpop.f32.mrf.mxu0
  %v188 = vadd.f32 0.0, %v187
  %v189 = vpop.f32.mrf.mxu0
  %190 = vmatprep.mubr.bf16.mxu0 0
  %191 = vmatmul.mubr.bf16.gmra.mxu0 %v80
  %v192 = vpop.f32.mrf.mxu0
  %v193 = vadd.f32 0.0, %v192
  %v194 = vpop.f32.mrf.mxu0
  %v195 = vpop.f32.mrf.mxu0
  %v196 = vadd.f32 0.0, %v195
  %v197 = vpop.f32.mrf.mxu0
  %198 = vmatprep.mubr.bf16.mxu0 0
  %199 = vmatmul.mubr.bf16.gmra.mxu0 %v81
  %v200 = vpop.f32.mrf.mxu0
  %v201 = vadd.f32 0.0, %v200
  %v202 = vpop.f32.mrf.mxu0
  %v203 = vpop.f32.mrf.mxu0
  %v204 = vadd.f32 0.0, %v203
  %v205 = vpop.f32.mrf.mxu0
  %206 = vmatprep.mubr.bf16.mxu0 0
  %207 = vmatmul.mubr.bf16.gmra.mxu0 %v82
  %v208 = vpop.f32.mrf.mxu0
  %v209 = vadd.f32 0.0, %v208
  %v210 = vpop.f32.mrf.mxu0
  %v211 = vpop.f32.mrf.mxu0
  %v212 = vadd.f32 0.0, %v211
  %v213 = vpop.f32.mrf.mxu0
  %214 = vmatprep.mubr.bf16.mxu0 0
  %215 = vmatmul.mubr.bf16.gmra.mxu0 %v83
  %v216 = vpop.f32.mrf.mxu0
  %v217 = vadd.f32 0.0, %v216
  %v218 = vpop.f32.mrf.mxu0
  %v219 = vpop.f32.mrf.mxu0
  %v220 = vadd.f32 0.0, %v219
  %v221 = vpop.f32.mrf.mxu0
  %222 = vmatprep.mubr.bf16.mxu0 0
  %223 = vmatmul.mubr.bf16.gmra.mxu0 %v84
  %v224 = vpop.f32.mrf.mxu0
  %v225 = vadd.f32 0.0, %v224
  %v226 = vpop.f32.mrf.mxu0
  %v227 = vpop.f32.mrf.mxu0
  %v228 = vadd.f32 0.0, %v227
  %v229 = vpop.f32.mrf.mxu0
  %230 = vmatprep.mubr.bf16.mxu0 0
  %231 = vmatmul.mubr.bf16.gmra.mxu0 %v85
  %v232 = vpop.f32.mrf.mxu0
  %v233 = vadd.f32 0.0, %v232
  %v234 = vpop.f32.mrf.mxu0
  %v235 = vpop.f32.mrf.mxu0
  %v236 = vadd.f32 0.0, %v235
  %v237 = vpop.f32.mrf.mxu0
  %238 = vdwg.mxu0
  %v239 = vpack.c.bf16 %v180, %v177
  %v240 = vpack.c.bf16 %v188, %v185
  %v241 = vpack.c.bf16 %v196, %v193
  %v242 = vpack.c.bf16 %v204, %v201
  %v243 = vpack.c.bf16 %v212, %v209
  %v244 = vpack.c.bf16 %v220, %v217
  %v245 = vpack.c.bf16 %v228, %v225
  %v246 = vpack.c.bf16 %v236, %v233
  %v255 = vunpack.c.l.b16 %v239
  %v256 = vunpack.c.h.b16 %v239
  %v257 = vunpack.c.l.b16 %v240
  %v258 = vunpack.c.h.b16 %v240
  %v259 = vunpack.c.l.b16 %v241
  %v260 = vunpack.c.h.b16 %v241
  %v261 = vunpack.c.l.b16 %v242
  %v262 = vunpack.c.h.b16 %v242
  %v263 = vunpack.c.l.b16 %v243
  %v264 = vunpack.c.h.b16 %v243
  %v265 = vunpack.c.l.b16 %v244
  %v266 = vunpack.c.h.b16 %v244
  %v267 = vunpack.c.l.b16 %v245
  %v268 = vunpack.c.h.b16 %v245
  %v269 = vunpack.c.l.b16 %v246
  %v270 = vunpack.c.h.b16 %v246
  %v271 = vpack.c.b16 %v255, %v255
  %v272 = vpack.c.b16 %v256, %v256
  %v273 = vpack.c.b16 %v257, %v257
  %v274 = vpack.c.b16 %v258, %v258
  %v275 = vpack.c.b16 %v259, %v259
  %v276 = vpack.c.b16 %v260, %v260
  %v277 = vpack.c.b16 %v261, %v261
  %v278 = vpack.c.b16 %v262, %v262
  %v279 = vpack.c.b16 %v263, %v263
  %v280 = vpack.c.b16 %v264, %v264
  %v281 = vpack.c.b16 %v265, %v265
  %v282 = vpack.c.b16 %v266, %v266
  %v283 = vpack.c.b16 %v267, %v267
  %v284 = vpack.c.b16 %v268, %v268
  %v285 = vpack.c.b16 %v269, %v269
  %v286 = vpack.c.b16 %v270, %v270
  %303 = vst [vmem:[%s2] sm:$0xf] %v271
  %304 = vst [vmem:[%s2 + $0x4] sm:$0xf] %v272
  %305 = vst [vmem:[%s2 + $0x8] sm:$0xf] %v273
  %306 = vst [vmem:[%s2 + $0xc] sm:$0xf] %v274
  %307 = vst [vmem:[%s2 + $0x10] sm:$0xf] %v275
  %308 = vst [vmem:[%s2 + $0x14] sm:$0xf] %v276
  %309 = vst [vmem:[%s2 + $0x18] sm:$0xf] %v277
  %310 = vst [vmem:[%s2 + $0x1c] sm:$0xf] %v278
  %311 = vst [vmem:[%s2 + $0x20] sm:$0xf] %v279
  %312 = vst [vmem:[%s2 + $0x24] sm:$0xf] %v280
  %313 = vst [vmem:[%s2 + $0x28] sm:$0xf] %v281
  %314 = vst [vmem:[%s2 + $0x2c] sm:$0xf] %v282
  %315 = vst [vmem:[%s2 + $0x30] sm:$0xf] %v283
  %316 = vst [vmem:[%s2 + $0x34] sm:$0xf] %v284
  %317 = vst [vmem:[%s2 + $0x38] sm:$0xf] %v285
  %318 = vst [vmem:[%s2 + $0x3c] sm:$0xf] %v286
  %v319 = vadd.f32 %v177, %v180
  %v320 = vadd.f32 %v319, %v185
  %v321 = vadd.f32 %v320, %v188
  %v322 = vadd.f32 %v321, %v193
  %v323 = vadd.f32 %v322, %v196
  %v324 = vadd.f32 %v323, %v201
  %v325 = vadd.f32 %v324, %v204
  %v326 = vadd.f32 %v325, %v209
  %v327 = vadd.f32 %v326, %v212
  %v328 = vadd.f32 %v327, %v217
  %v329 = vadd.f32 %v328, %v220
  %v330 = vadd.f32 %v329, %v225
  %v331 = vadd.f32 %v330, %v228
  %v332 = vadd.f32 %v331, %v233
  %v333 = vadd.f32 %v332, %v236
  %v334 = vrot.slane %v333, 4
  %v335 = vadd.f32 %v333, %v334
  %v336 = vrot.slane %v335, 2
  %v337 = vadd.f32 %v335, %v336
  %v338 = vrot.slane %v337, 1
  %v339 = vadd.f32 %v337, %v338
  %v340 = vmul.f32 %v177, %v177
  %v341 = vmul.f32 %v180, %v180
  %v342 = vmul.f32 %v185, %v185
  %v343 = vmul.f32 %v188, %v188
  %v344 = vmul.f32 %v193, %v193
  %v345 = vmul.f32 %v196, %v196
  %v346 = vmul.f32 %v201, %v201
  %v347 = vmul.f32 %v204, %v204
  %v348 = vmul.f32 %v209, %v209
  %v349 = vmul.f32 %v212, %v212
  %v350 = vmul.f32 %v217, %v217
  %v351 = vmul.f32 %v220, %v220
  %v352 = vmul.f32 %v225, %v225
  %v353 = vmul.f32 %v228, %v228
  %v354 = vmul.f32 %v233, %v233
  %v355 = vmul.f32 %v236, %v236
  %v356 = vadd.f32 %v340, %v341
  %v357 = vadd.f32 %v356, %v342
  %v358 = vadd.f32 %v357, %v343
  %v359 = vadd.f32 %v358, %v344
  %v360 = vadd.f32 %v359, %v345
  %v361 = vadd.f32 %v360, %v346
  %v362 = vadd.f32 %v361, %v347
  %v363 = vadd.f32 %v362, %v348
  %v364 = vadd.f32 %v363, %v349
  %v365 = vadd.f32 %v364, %v350
  %v366 = vadd.f32 %v365, %v351
  %v367 = vadd.f32 %v366, %v352
  %v368 = vadd.f32 %v367, %v353
  %v369 = vadd.f32 %v368, %v354
  %v370 = vadd.f32 %v369, %v355
  %v371 = vrot.slane %v370, 4
  %v372 = vadd.f32 %v370, %v371
  %v373 = vrot.slane %v372, 2
  %v374 = vadd.f32 %v372, %v373
  %v375 = vrot.slane %v374, 1
  %v376 = vadd.f32 %v374, %v375
  %vm377 = vcmask 1040384
  %v378 = vsel %vm377, %v339, %v376
  %379 = vst [vmem:[%s3] sm:$0x3] %v378
  // Predicated region
  $region10: #{subnet_basic_block_forward.4} parent=0 // pred_check
    _
  $region11: #{subnet_basic_block_forward.4} parent=0 // pred_check_branch
    %381 = sbr.rel (0) target = $region13
  $region12: #{subnet_basic_block_forward.4} parent=0 // pred_region
    _
  $region13: #{subnet_basic_block_forward.4} parent=0 // pred_fallthru
    _
  // Predicated region
  $region14: #{subnet_basic_block_forward.4} parent=0 // pred_check
    _
  $region15: #{subnet_basic_block_forward.4} parent=0 // pred_check_branch
    %383 = sbr.rel (0) target = $region17
  $region16: #{subnet_basic_block_forward.4} parent=0 // pred_region
    _
  $region17: #{subnet_basic_block_forward.4} parent=0 // pred_fallthru
    _
  // Predicated region
  $region18: #{subnet_basic_block_forward.4} parent=0 // pred_check
    _
  $region19: #{subnet_basic_block_forward.4} parent=0 // pred_check_branch
    %385 = sbr.rel (0) target = $region21
  $region20: #{subnet_basic_block_forward.4} parent=0 // pred_region
    _
  $region21: #{subnet_basic_block_forward.4} parent=0 // pred_fallthru
    _
  // Predicated region
  $region22: #{subnet_basic_block_forward.4} parent=0 // pred_check
    _
  $region23: #{subnet_basic_block_forward.4} parent=0 // pred_check_branch
    %387 = sbr.rel (0) target = $region25
  $region24: #{subnet_basic_block_forward.4} parent=0 // pred_region
    _
  $region25: #{subnet_basic_block_forward.4} parent=0 // pred_fallthru
    _

// kernel: subnet_basic_block_forward.7
$region0: #{subnet_basic_block_forward.7}
  #allocation0 [shape = 'u32[]', space=smem, size = 0x4, offset = 0x4, fixed_abs, tag = 'smem constant byte address 0x4 - core index']
  #allocation1 [shape = 'u32[144,128]{1,0:T(1,128)}', space=vmem, size = 0x12000, scoped, tag = 'internal scratch']
  %s0 = inlined_call_operand.vmem [shape: bf16[128,128], index: 0, kind: input, shape index: {}]
  %s1 = inlined_call_operand.vmem [shape: f32[2,128], index: 1, kind: input, shape index: {}]
  %s2 = inlined_call_operand.vmem [shape: bf16[128,128], index: 2, kind: input, shape index: {}]
  %s3 = inlined_call_operand.vmem [shape: f32[2,128], index: 3, kind: input, shape index: {}]
  %s4 = inlined_call_operand.vmem [shape: f32[128,128], index: 4, kind: output, shape index: {}]
  %s5 = sld [smem:[#allocation0]]
  $region26: #{subnet_basic_block_forward.7} parent=0
    _
  %s7 = ssub.s32 1, %s5
  %s8 = scalar_select 0, %s7, %s5
  // Predicated region
  $region2: #{subnet_basic_block_forward.7} parent=0 // pred_check
    _
  $region3: #{subnet_basic_block_forward.7} parent=0 // pred_check_branch
    %10 = sbr.rel (0) target = $region5
  $region4: #{subnet_basic_block_forward.7} parent=0 // pred_region
    _
  $region5: #{subnet_basic_block_forward.7} parent=0 // pred_fallthru
    _
  // Predicated region
  $region6: #{subnet_basic_block_forward.7} parent=0 // pred_check
    _
  $region7: #{subnet_basic_block_forward.7} parent=0 // pred_check_branch
    %12 = sbr.rel (0) target = $region9
  $region8: #{subnet_basic_block_forward.7} parent=0 // pred_region
    _
  $region9: #{subnet_basic_block_forward.7} parent=0 // pred_fallthru
    _
  // Predicated region
  $region10: #{subnet_basic_block_forward.7} parent=0 // pred_check
    _
  $region11: #{subnet_basic_block_forward.7} parent=0 // pred_check_branch
    %14 = sbr.rel (0) target = $region13
  $region12: #{subnet_basic_block_forward.7} parent=0 // pred_region
    _
  $region13: #{subnet_basic_block_forward.7} parent=0 // pred_fallthru
    _
  // Predicated region
  $region14: #{subnet_basic_block_forward.7} parent=0 // pred_check
    _
  $region15: #{subnet_basic_block_forward.7} parent=0 // pred_check_branch
    %16 = sbr.rel (0) target = $region17
  $region16: #{subnet_basic_block_forward.7} parent=0 // pred_region
    _
  $region17: #{subnet_basic_block_forward.7} parent=0 // pred_fallthru
    _
  %v17 = vld [vmem:[%s1] sm:$0x1]
  %v18 = vld [vmem:[%s1 + $0x1] sm:$0x1]
  %v19 = vld [vmem:[%s3] sm:$0x1]
  %v20 = vld [vmem:[%s3 + $0x1] sm:$0x1]
  %v21 = vld [vmem:[%s0] sm:$0xf]
  %v22 = vld [vmem:[%s0 + $0x4] sm:$0xf]
  %v23 = vld [vmem:[%s0 + $0x8] sm:$0xf]
  %v24 = vld [vmem:[%s0 + $0xc] sm:$0xf]
  %v25 = vld [vmem:[%s0 + $0x10] sm:$0xf]
  %v26 = vld [vmem:[%s0 + $0x14] sm:$0xf]
  %v27 = vld [vmem:[%s0 + $0x18] sm:$0xf]
  %v28 = vld [vmem:[%s0 + $0x1c] sm:$0xf]
  %v29 = vld [vmem:[%s0 + $0x20] sm:$0xf]
  %v30 = vld [vmem:[%s0 + $0x24] sm:$0xf]
  %v31 = vld [vmem:[%s0 + $0x28] sm:$0xf]
  %v32 = vld [vmem:[%s0 + $0x2c] sm:$0xf]
  %v33 = vld [vmem:[%s0 + $0x30] sm:$0xf]
  %v34 = vld [vmem:[%s0 + $0x34] sm:$0xf]
  %v35 = vld [vmem:[%s0 + $0x38] sm:$0xf]
  %v36 = vld [vmem:[%s0 + $0x3c] sm:$0xf]
  %v37 = vunpack.c.l.bf16 %v21
  %v38 = vunpack.c.l.bf16 %v22
  %v39 = vunpack.c.l.bf16 %v23
  %v40 = vunpack.c.l.bf16 %v24
  %v41 = vunpack.c.l.bf16 %v25
  %v42 = vunpack.c.l.bf16 %v26
  %v43 = vunpack.c.l.bf16 %v27
  %v44 = vunpack.c.l.bf16 %v28
  %v45 = vunpack.c.l.bf16 %v29
  %v46 = vunpack.c.l.bf16 %v30
  %v47 = vunpack.c.l.bf16 %v31
  %v48 = vunpack.c.l.bf16 %v32
  %v49 = vunpack.c.l.bf16 %v33
  %v50 = vunpack.c.l.bf16 %v34
  %v51 = vunpack.c.l.bf16 %v35
  %v52 = vunpack.c.l.bf16 %v36
  %v53 = vlaneseq
  %v54 = vshrl.u32 %v53, 7
  %v55 = vsub.s32 0, %v54
  %v56 = vrot.slane %v17, %v55
  %v57 = vsub.f32 %v37, %v56
  %v58 = vsub.f32 %v38, %v56
  %v59 = vsub.f32 %v39, %v56
  %v60 = vsub.f32 %v40, %v56
  %v61 = vsub.f32 %v41, %v56
  %v62 = vsub.f32 %v42, %v56
  %v63 = vsub.f32 %v43, %v56
  %v64 = vsub.f32 %v44, %v56
  %v65 = vsub.f32 %v45, %v56
  %v66 = vsub.f32 %v46, %v56
  %v67 = vsub.f32 %v47, %v56
  %v68 = vsub.f32 %v48, %v56
  %v69 = vsub.f32 %v49, %v56
  %v70 = vsub.f32 %v50, %v56
  %v71 = vsub.f32 %v51, %v56
  %v72 = vsub.f32 %v52, %v56
  %v73 = vlaneseq
  %v74 = vshrl.u32 %v73, 7
  %v75 = vsub.s32 0, %v74
  %v76 = vrot.slane %v18, %v75
  %v77 = vmul.f32 %v57, %v76
  %v78 = vmul.f32 %v58, %v76
  %v79 = vmul.f32 %v59, %v76
  %v80 = vmul.f32 %v60, %v76
  %v81 = vmul.f32 %v61, %v76
  %v82 = vmul.f32 %v62, %v76
  %v83 = vmul.f32 %v63, %v76
  %v84 = vmul.f32 %v64, %v76
  %v85 = vmul.f32 %v65, %v76
  %v86 = vmul.f32 %v66, %v76
  %v87 = vmul.f32 %v67, %v76
  %v88 = vmul.f32 %v68, %v76
  %v89 = vmul.f32 %v69, %v76
  %v90 = vmul.f32 %v70, %v76
  %v91 = vmul.f32 %v71, %v76
  %v92 = vmul.f32 %v72, %v76
  %v93 = vld [vmem:[%s2] sm:$0xf]
  %v94 = vld [vmem:[%s2 + $0x4] sm:$0xf]
  %v95 = vld [vmem:[%s2 + $0x8] sm:$0xf]
  %v96 = vld [vmem:[%s2 + $0xc] sm:$0xf]
  %v97 = vld [vmem:[%s2 + $0x10] sm:$0xf]
  %v98 = vld [vmem:[%s2 + $0x14] sm:$0xf]
  %v99 = vld [vmem:[%s2 + $0x18] sm:$0xf]
  %v100 = vld [vmem:[%s2 + $0x1c] sm:$0xf]
  %v101 = vld [vmem:[%s2 + $0x20] sm:$0xf]
  %v102 = vld [vmem:[%s2 + $0x24] sm:$0xf]
  %v103 = vld [vmem:[%s2 + $0x28] sm:$0xf]
  %v104 = vld [vmem:[%s2 + $0x2c] sm:$0xf]
  %v105 = vld [vmem:[%s2 + $0x30] sm:$0xf]
  %v106 = vld [vmem:[%s2 + $0x34] sm:$0xf]
  %v107 = vld [vmem:[%s2 + $0x38] sm:$0xf]
  %v108 = vld [vmem:[%s2 + $0x3c] sm:$0xf]
  %v109 = vunpack.c.l.bf16 %v93
  %v110 = vunpack.c.l.bf16 %v94
  %v111 = vunpack.c.l.bf16 %v95
  %v112 = vunpack.c.l.bf16 %v96
  %v113 = vunpack.c.l.bf16 %v97
  %v114 = vunpack.c.l.bf16 %v98
  %v115 = vunpack.c.l.bf16 %v99
  %v116 = vunpack.c.l.bf16 %v100
  %v117 = vunpack.c.l.bf16 %v101
  %v118 = vunpack.c.l.bf16 %v102
  %v119 = vunpack.c.l.bf16 %v103
  %v120 = vunpack.c.l.bf16 %v104
  %v121 = vunpack.c.l.bf16 %v105
  %v122 = vunpack.c.l.bf16 %v106
  %v123 = vunpack.c.l.bf16 %v107
  %v124 = vunpack.c.l.bf16 %v108
  %v125 = vlaneseq
  %v126 = vshrl.u32 %v125, 7
  %v127 = vsub.s32 0, %v126
  %v128 = vrot.slane %v19, %v127
  %v129 = vsub.f32 %v109, %v128
  %v130 = vsub.f32 %v110, %v128
  %v131 = vsub.f32 %v111, %v128
  %v132 = vsub.f32 %v112, %v128
  %v133 = vsub.f32 %v113, %v128
  %v134 = vsub.f32 %v114, %v128
  %v135 = vsub.f32 %v115, %v128
  %v136 = vsub.f32 %v116, %v128
  %v137 = vsub.f32 %v117, %v128
  %v138 = vsub.f32 %v118, %v128
  %v139 = vsub.f32 %v119, %v128
  %v140 = vsub.f32 %v120, %v128
  %v141 = vsub.f32 %v121, %v128
  %v142 = vsub.f32 %v122, %v128
  %v143 = vsub.f32 %v123, %v128
  %v144 = vsub.f32 %v124, %v128
  %v145 = vlaneseq
  %v146 = vshrl.u32 %v145, 7
  %v147 = vsub.s32 0, %v146
  %v148 = vrot.slane %v20, %v147
  %v149 = vmul.f32 %v129, %v148
  %v150 = vmul.f32 %v130, %v148
  %v151 = vmul.f32 %v131, %v148
  %v152 = vmul.f32 %v132, %v148
  %v153 = vmul.f32 %v133, %v148
  %v154 = vmul.f32 %v134, %v148
  %v155 = vmul.f32 %v135, %v148
  %v156 = vmul.f32 %v136, %v148
  %v157 = vmul.f32 %v137, %v148
  %v158 = vmul.f32 %v138, %v148
  %v159 = vmul.f32 %v139, %v148
  %v160 = vmul.f32 %v140, %v148
  %v161 = vmul.f32 %v141, %v148
  %v162 = vmul.f32 %v142, %v148
  %v163 = vmul.f32 %v143, %v148
  %v164 = vmul.f32 %v144, %v148
  %v165 = vadd.f32 %v77, %v149
  %v166 = vadd.f32 %v78, %v150
  %v167 = vadd.f32 %v79, %v151
  %v168 = vadd.f32 %v80, %v152
  %v169 = vadd.f32 %v81, %v153
  %v170 = vadd.f32 %v82, %v154
  %v171 = vadd.f32 %v83, %v155
  %v172 = vadd.f32 %v84, %v156
  %v173 = vadd.f32 %v85, %v157
  %v174 = vadd.f32 %v86, %v158
  %v175 = vadd.f32 %v87, %v159
  %v176 = vadd.f32 %v88, %v160
  %v177 = vadd.f32 %v89, %v161
  %v178 = vadd.f32 %v90, %v162
  %v179 = vadd.f32 %v91, %v163
  %v180 = vadd.f32 %v92, %v164
  %v181 = vmax.f32 %v165, 0.0
  %v182 = vmax.f32 %v166, 0.0
  %v183 = vmax.f32 %v167, 0.0
  %v184 = vmax.f32 %v168, 0.0
  %v185 = vmax.f32 %v169, 0.0
  %v186 = vmax.f32 %v170, 0.0
  %v187 = vmax.f32 %v171, 0.0
  %v188 = vmax.f32 %v172, 0.0
  %v189 = vmax.f32 %v173, 0.0
  %v190 = vmax.f32 %v174, 0.0
  %v191 = vmax.f32 %v175, 0.0
  %v192 = vmax.f32 %v176, 0.0
  %v193 = vmax.f32 %v177, 0.0
  %v194 = vmax.f32 %v178, 0.0
  %v195 = vmax.f32 %v179, 0.0
  %v196 = vmax.f32 %v180, 0.0
  %197 = vst [vmem:[%s4] sm:$0xff] %v181
  %198 = vst [vmem:[%s4 + $0x8] sm:$0xff] %v182
  %199 = vst [vmem:[%s4 + $0x10] sm:$0xff] %v183
  %200 = vst [vmem:[%s4 + $0x18] sm:$0xff] %v184
  %201 = vst [vmem:[%s4 + $0x20] sm:$0xff] %v185
  %202 = vst [vmem:[%s4 + $0x28] sm:$0xff] %v186
  %203 = vst [vmem:[%s4 + $0x30] sm:$0xff] %v187
  %204 = vst [vmem:[%s4 + $0x38] sm:$0xff] %v188
  %205 = vst [vmem:[%s4 + $0x40] sm:$0xff] %v189
  %206 = vst [vmem:[%s4 + $0x48] sm:$0xff] %v190
  %207 = vst [vmem:[%s4 + $0x50] sm:$0xff] %v191
  %208 = vst [vmem:[%s4 + $0x58] sm:$0xff] %v192
  %209 = vst [vmem:[%s4 + $0x60] sm:$0xff] %v193
  %210 = vst [vmem:[%s4 + $0x68] sm:$0xff] %v194
  %211 = vst [vmem:[%s4 + $0x70] sm:$0xff] %v195
  %212 = vst [vmem:[%s4 + $0x78] sm:$0xff] %v196
  // Predicated region
  $region18: #{subnet_basic_block_forward.7} parent=0 // pred_check
    _
  $region19: #{subnet_basic_block_forward.7} parent=0 // pred_check_branch
    %214 = sbr.rel (0) target = $region21
  $region20: #{subnet_basic_block_forward.7} parent=0 // pred_region
    _
  $region21: #{subnet_basic_block_forward.7} parent=0 // pred_fallthru
    _
  // Predicated region
  $region22: #{subnet_basic_block_forward.7} parent=0 // pred_check
    _
  $region23: #{subnet_basic_block_forward.7} parent=0 // pred_check_branch
    %216 = sbr.rel (0) target = $region25
  $region24: #{subnet_basic_block_forward.7} parent=0 // pred_region
    _
  $region25: #{subnet_basic_block_forward.7} parent=0 // pred_fallthru
    _

// kernel: subnet_basic_block_forward.6
$region0: #{subnet_basic_block_forward.6}
  #allocation0 [shape = 'u32[]', space=smem, size = 0x4, offset = 0x4, fixed_abs, tag = 'smem constant byte address 0x4 - core index']
  #allocation1 [shape = 'u32[144,128]{1,0:T(1,128)}', space=vmem, size = 0x12000, scoped, tag = 'internal scratch']
  %s0 = inlined_call_operand.vmem [shape: bf16[128,128], index: 0, kind: input, shape index: {}]
  %s1 = inlined_call_operand.vmem [shape: bf16[128,128], index: 1, kind: input, shape index: {}]
  %s2 = inlined_call_operand.vmem [shape: bf16[128,128], index: 2, kind: input, shape index: {}]
  %s3 = inlined_call_operand.vmem [shape: bf16[128,128], index: 3, kind: input, shape index: {}]
  %s4 = inlined_call_operand.vmem [shape: bf16[128,128], index: 4, kind: output, shape index: {0}]
  %s5 = inlined_call_operand.vmem [shape: bf16[128,128], index: 5, kind: output, shape index: {1}]
  %s6 = inlined_call_operand.vmem [shape: f32[1,2,128], index: 6, kind: output, shape index: {2}]
  %s7 = inlined_call_operand.vmem [shape: f32[1,2,128], index: 7, kind: output, shape index: {3}]
  %8 = xla_tuple %s4, %s5, %s6, %s7
  %s9 = sld [smem:[#allocation0]]
  $region50: #{subnet_basic_block_forward.6} parent=0
    _
  %s11 = ssub.s32 1, %s9
  %s12 = scalar_select 0, %s11, %s9
  // Predicated region
  $region2: #{subnet_basic_block_forward.6} parent=0 // pred_check
    _
  $region3: #{subnet_basic_block_forward.6} parent=0 // pred_check_branch
    %14 = sbr.rel (0) target = $region5
  $region4: #{subnet_basic_block_forward.6} parent=0 // pred_region
    _
  $region5: #{subnet_basic_block_forward.6} parent=0 // pred_fallthru
    _
  // Predicated region
  $region6: #{subnet_basic_block_forward.6} parent=0 // pred_check
    _
  $region7: #{subnet_basic_block_forward.6} parent=0 // pred_check_branch
    %16 = sbr.rel (0) target = $region9
  $region8: #{subnet_basic_block_forward.6} parent=0 // pred_region
    _
  $region9: #{subnet_basic_block_forward.6} parent=0 // pred_fallthru
    _
  // Predicated region
  $region10: #{subnet_basic_block_forward.6} parent=0 // pred_check
    _
  $region11: #{subnet_basic_block_forward.6} parent=0 // pred_check_branch
    %18 = sbr.rel (0) target = $region13
  $region12: #{subnet_basic_block_forward.6} parent=0 // pred_region
    _
  $region13: #{subnet_basic_block_forward.6} parent=0 // pred_fallthru
    _
  // Predicated region
  $region14: #{subnet_basic_block_forward.6} parent=0 // pred_check
    _
  $region15: #{subnet_basic_block_forward.6} parent=0 // pred_check_branch
    %20 = sbr.rel (0) target = $region17
  $region16: #{subnet_basic_block_forward.6} parent=0 // pred_region
    _
  $region17: #{subnet_basic_block_forward.6} parent=0 // pred_fallthru
    _
  %v22 = vld [vmem:[%s0] sm:$0xf]
  %v23 = vld [vmem:[%s0 + $0x4] sm:$0xf]
  %v24 = vld [vmem:[%s0 + $0x8] sm:$0xf]
  %v25 = vld [vmem:[%s0 + $0xc] sm:$0xf]
  %v26 = vld [vmem:[%s0 + $0x10] sm:$0xf]
  %v27 = vld [vmem:[%s0 + $0x14] sm:$0xf]
  %v28 = vld [vmem:[%s0 + $0x18] sm:$0xf]
  %v29 = vld [vmem:[%s0 + $0x1c] sm:$0xf]
  %v30 = vld [vmem:[%s0 + $0x20] sm:$0xf]
  %v31 = vld [vmem:[%s0 + $0x24] sm:$0xf]
  %v32 = vld [vmem:[%s0 + $0x28] sm:$0xf]
  %v33 = vld [vmem:[%s0 + $0x2c] sm:$0xf]
  %v34 = vld [vmem:[%s0 + $0x30] sm:$0xf]
  %v35 = vld [vmem:[%s0 + $0x34] sm:$0xf]
  %v36 = vld [vmem:[%s0 + $0x38] sm:$0xf]
  %v37 = vld [vmem:[%s0 + $0x3c] sm:$0xf]
  %v38 = vld [vmem:[%s1] sm:$0xf]
  %v39 = vld [vmem:[%s1 + $0x4] sm:$0xf]
  %v40 = vld [vmem:[%s1 + $0x8] sm:$0xf]
  %v41 = vld [vmem:[%s1 + $0xc] sm:$0xf]
  %v42 = vld [vmem:[%s1 + $0x10] sm:$0xf]
  %v43 = vld [vmem:[%s1 + $0x14] sm:$0xf]
  %v44 = vld [vmem:[%s1 + $0x18] sm:$0xf]
  %v45 = vld [vmem:[%s1 + $0x1c] sm:$0xf]
  %v46 = vld [vmem:[%s1 + $0x20] sm:$0xf]
  %v47 = vld [vmem:[%s1 + $0x24] sm:$0xf]
  %v48 = vld [vmem:[%s1 + $0x28] sm:$0xf]
  %v49 = vld [vmem:[%s1 + $0x2c] sm:$0xf]
  %v50 = vld [vmem:[%s1 + $0x30] sm:$0xf]
  %v51 = vld [vmem:[%s1 + $0x34] sm:$0xf]
  %v52 = vld [vmem:[%s1 + $0x38] sm:$0xf]
  %v53 = vld [vmem:[%s1 + $0x3c] sm:$0xf]
  %v70 = vunpack.c.l.b16 %v22
  %v71 = vunpack.c.l.b16 %v23
  %v72 = vunpack.c.l.b16 %v24
  %v73 = vunpack.c.l.b16 %v25
  %v74 = vunpack.c.l.b16 %v26
  %v75 = vunpack.c.l.b16 %v27
  %v76 = vunpack.c.l.b16 %v28
  %v77 = vunpack.c.l.b16 %v29
  %v78 = vunpack.c.l.b16 %v30
  %v79 = vunpack.c.l.b16 %v31
  %v80 = vunpack.c.l.b16 %v32
  %v81 = vunpack.c.l.b16 %v33
  %v82 = vunpack.c.l.b16 %v34
  %v83 = vunpack.c.l.b16 %v35
  %v84 = vunpack.c.l.b16 %v36
  %v85 = vunpack.c.l.b16 %v37
  %v86 = vpack.c.b16 %v71, %v70
  %v87 = vpack.c.b16 %v73, %v72
  %v88 = vpack.c.b16 %v75, %v74
  %v89 = vpack.c.b16 %v77, %v76
  %v90 = vpack.c.b16 %v79, %v78
  %v91 = vpack.c.b16 %v81, %v80
  %v92 = vpack.c.b16 %v83, %v82
  %v93 = vpack.c.b16 %v85, %v84
  %v118 = vunpack.c.l.b16 %v38
  %v119 = vunpack.c.l.b16 %v39
  %v120 = vunpack.c.l.b16 %v40
  %v121 = vunpack.c.l.b16 %v41
  %v122 = vunpack.c.l.b16 %v42
  %v123 = vunpack.c.l.b16 %v43
  %v124 = vunpack.c.l.b16 %v44
  %v125 = vunpack.c.l.b16 %v45
  %v126 = vunpack.c.l.b16 %v46
  %v127 = vunpack.c.l.b16 %v47
  %v128 = vunpack.c.l.b16 %v48
  %v129 = vunpack.c.l.b16 %v49
  %v130 = vunpack.c.l.b16 %v50
  %v131 = vunpack.c.l.b16 %v51
  %v132 = vunpack.c.l.b16 %v52
  %v133 = vunpack.c.l.b16 %v53
  %v134 = vpack.c.b16 %v119, %v118
  %v135 = vpack.c.b16 %v121, %v120
  %v136 = vpack.c.b16 %v123, %v122
  %v137 = vpack.c.b16 %v125, %v124
  %v138 = vpack.c.b16 %v127, %v126
  %v139 = vpack.c.b16 %v129, %v128
  %v140 = vpack.c.b16 %v131, %v130
  %v141 = vpack.c.b16 %v133, %v132
  %150 = vmatprep.subr.bf16.mxu0 0
  %151 = vmatpush1.bf16.msra.mxu0 %v141
  %152 = vmatprep.subr.bf16.mxu0 0
  %153 = vmatpush1.bf16.msra.mxu0 %v140
  %154 = vmatprep.subr.bf16.mxu0 0
  %155 = vmatpush1.bf16.msra.mxu0 %v139
  %156 = vmatprep.subr.bf16.mxu0 0
  %157 = vmatpush1.bf16.msra.mxu0 %v138
  %158 = vmatprep.subr.bf16.mxu0 0
  %159 = vmatpush1.bf16.msra.mxu0 %v137
  %160 = vmatprep.subr.bf16.mxu0 0
  %161 = vmatpush1.bf16.msra.mxu0 %v136
  %162 = vmatprep.subr.bf16.mxu0 0
  %163 = vmatpush1.bf16.msra.mxu0 %v135
  %164 = vmatprep.subr.bf16.mxu0 0
  %165 = vmatpush1.bf16.msra.mxu0 %v134
  %166 = vmatprep.subr.bf16.mxu0 0
  %167 = vmatpush2.bf16.msra.mxu0 0
  %168 = vmatprep.subr.bf16.mxu0 0
  %169 = vmatpush2.bf16.msra.mxu0 0
  %170 = vmatprep.subr.bf16.mxu0 0
  %171 = vmatpush2.bf16.msra.mxu0 0
  %172 = vmatprep.subr.bf16.mxu0 0
  %173 = vmatpush2.bf16.msra.mxu0 0
  %174 = vmatprep.subr.bf16.mxu0 0
  %175 = vmatpush2.bf16.msra.mxu0 0
  %176 = vmatprep.subr.bf16.mxu0 0
  %177 = vmatpush2.bf16.msra.mxu0 0
  %178 = vmatprep.subr.bf16.mxu0 0
  %179 = vmatpush2.bf16.msra.mxu0 0
  %180 = vmatprep.subr.bf16.mxu0 0
  %181 = vmatpush2.bf16.msra.mxu0 0
  %182 = vmatprep.mubr.bf16.mxu0 0
  %183 = vmatmul.mubr.bf16.gmra.mxu0 %v86
  %v184 = vpop.f32.mrf.mxu0
  %v185 = vadd.f32 0.0, %v184
  %v186 = vpop.f32.mrf.mxu0
  %v187 = vpop.f32.mrf.mxu0
  %v188 = vadd.f32 0.0, %v187
  %v189 = vpop.f32.mrf.mxu0
  %190 = vmatprep.mubr.bf16.mxu0 0
  %191 = vmatmul.mubr.bf16.gmra.mxu0 %v87
  %v192 = vpop.f32.mrf.mxu0
  %v193 = vadd.f32 0.0, %v192
  %v194 = vpop.f32.mrf.mxu0
  %v195 = vpop.f32.mrf.mxu0
  %v196 = vadd.f32 0.0, %v195
  %v197 = vpop.f32.mrf.mxu0
  %198 = vmatprep.mubr.bf16.mxu0 0
  %199 = vmatmul.mubr.bf16.gmra.mxu0 %v88
  %v200 = vpop.f32.mrf.mxu0
  %v201 = vadd.f32 0.0, %v200
  %v202 = vpop.f32.mrf.mxu0
  %v203 = vpop.f32.mrf.mxu0
  %v204 = vadd.f32 0.0, %v203
  %v205 = vpop.f32.mrf.mxu0
  %206 = vmatprep.mubr.bf16.mxu0 0
  %207 = vmatmul.mubr.bf16.gmra.mxu0 %v89
  %v208 = vpop.f32.mrf.mxu0
  %v209 = vadd.f32 0.0, %v208
  %v210 = vpop.f32.mrf.mxu0
  %v211 = vpop.f32.mrf.mxu0
  %v212 = vadd.f32 0.0, %v211
  %v213 = vpop.f32.mrf.mxu0
  %214 = vmatprep.mubr.bf16.mxu0 0
  %215 = vmatmul.mubr.bf16.gmra.mxu0 %v90
  %v216 = vpop.f32.mrf.mxu0
  %v217 = vadd.f32 0.0, %v216
  %v218 = vpop.f32.mrf.mxu0
  %v219 = vpop.f32.mrf.mxu0
  %v220 = vadd.f32 0.0, %v219
  %v221 = vpop.f32.mrf.mxu0
  %222 = vmatprep.mubr.bf16.mxu0 0
  %223 = vmatmul.mubr.bf16.gmra.mxu0 %v91
  %v224 = vpop.f32.mrf.mxu0
  %v225 = vadd.f32 0.0, %v224
  %v226 = vpop.f32.mrf.mxu0
  %v227 = vpop.f32.mrf.mxu0
  %v228 = vadd.f32 0.0, %v227
  %v229 = vpop.f32.mrf.mxu0
  %230 = vmatprep.mubr.bf16.mxu0 0
  %231 = vmatmul.mubr.bf16.gmra.mxu0 %v92
  %v232 = vpop.f32.mrf.mxu0
  %v233 = vadd.f32 0.0, %v232
  %v234 = vpop.f32.mrf.mxu0
  %v235 = vpop.f32.mrf.mxu0
  %v236 = vadd.f32 0.0, %v235
  %v237 = vpop.f32.mrf.mxu0
  %238 = vmatprep.mubr.bf16.mxu0 0
  %239 = vmatmul.mubr.bf16.gmra.mxu0 %v93
  %v240 = vpop.f32.mrf.mxu0
  %v241 = vadd.f32 0.0, %v240
  %v242 = vpop.f32.mrf.mxu0
  %v243 = vpop.f32.mrf.mxu0
  %v244 = vadd.f32 0.0, %v243
  %v245 = vpop.f32.mrf.mxu0
  %246 = vdwg.mxu0
  %v247 = vld [vmem:[%s2] sm:$0xf]
  %v248 = vld [vmem:[%s2 + $0x4] sm:$0xf]
  %v249 = vld [vmem:[%s2 + $0x8] sm:$0xf]
  %v250 = vld [vmem:[%s2 + $0xc] sm:$0xf]
  %v251 = vld [vmem:[%s2 + $0x10] sm:$0xf]
  %v252 = vld [vmem:[%s2 + $0x14] sm:$0xf]
  %v253 = vld [vmem:[%s2 + $0x18] sm:$0xf]
  %v254 = vld [vmem:[%s2 + $0x1c] sm:$0xf]
  %v255 = vld [vmem:[%s2 + $0x20] sm:$0xf]
  %v256 = vld [vmem:[%s2 + $0x24] sm:$0xf]
  %v257 = vld [vmem:[%s2 + $0x28] sm:$0xf]
  %v258 = vld [vmem:[%s2 + $0x2c] sm:$0xf]
  %v259 = vld [vmem:[%s2 + $0x30] sm:$0xf]
  %v260 = vld [vmem:[%s2 + $0x34] sm:$0xf]
  %v261 = vld [vmem:[%s2 + $0x38] sm:$0xf]
  %v262 = vld [vmem:[%s2 + $0x3c] sm:$0xf]
  %v263 = vld [vmem:[%s3] sm:$0xf]
  %v264 = vld [vmem:[%s3 + $0x4] sm:$0xf]
  %v265 = vld [vmem:[%s3 + $0x8] sm:$0xf]
  %v266 = vld [vmem:[%s3 + $0xc] sm:$0xf]
  %v267 = vld [vmem:[%s3 + $0x10] sm:$0xf]
  %v268 = vld [vmem:[%s3 + $0x14] sm:$0xf]
  %v269 = vld [vmem:[%s3 + $0x18] sm:$0xf]
  %v270 = vld [vmem:[%s3 + $0x1c] sm:$0xf]
  %v271 = vld [vmem:[%s3 + $0x20] sm:$0xf]
  %v272 = vld [vmem:[%s3 + $0x24] sm:$0xf]
  %v273 = vld [vmem:[%s3 + $0x28] sm:$0xf]
  %v274 = vld [vmem:[%s3 + $0x2c] sm:$0xf]
  %v275 = vld [vmem:[%s3 + $0x30] sm:$0xf]
  %v276 = vld [vmem:[%s3 + $0x34] sm:$0xf]
  %v277 = vld [vmem:[%s3 + $0x38] sm:$0xf]
  %v278 = vld [vmem:[%s3 + $0x3c] sm:$0xf]
  %v295 = vunpack.c.l.b16 %v247
  %v296 = vunpack.c.l.b16 %v248
  %v297 = vunpack.c.l.b16 %v249
  %v298 = vunpack.c.l.b16 %v250
  %v299 = vunpack.c.l.b16 %v251
  %v300 = vunpack.c.l.b16 %v252
  %v301 = vunpack.c.l.b16 %v253
  %v302 = vunpack.c.l.b16 %v254
  %v303 = vunpack.c.l.b16 %v255
  %v304 = vunpack.c.l.b16 %v256
  %v305 = vunpack.c.l.b16 %v257
  %v306 = vunpack.c.l.b16 %v258
  %v307 = vunpack.c.l.b16 %v259
  %v308 = vunpack.c.l.b16 %v260
  %v309 = vunpack.c.l.b16 %v261
  %v310 = vunpack.c.l.b16 %v262
  %v311 = vpack.c.b16 %v296, %v295
  %v312 = vpack.c.b16 %v298, %v297
  %v313 = vpack.c.b16 %v300, %v299
  %v314 = vpack.c.b16 %v302, %v301
  %v315 = vpack.c.b16 %v304, %v303
  %v316 = vpack.c.b16 %v306, %v305
  %v317 = vpack.c.b16 %v308, %v307
  %v318 = vpack.c.b16 %v310, %v309
  %v343 = vunpack.c.l.b16 %v263
  %v344 = vunpack.c.l.b16 %v264
  %v345 = vunpack.c.l.b16 %v265
  %v346 = vunpack.c.l.b16 %v266
  %v347 = vunpack.c.l.b16 %v267
  %v348 = vunpack.c.l.b16 %v268
  %v349 = vunpack.c.l.b16 %v269
  %v350 = vunpack.c.l.b16 %v270
  %v351 = vunpack.c.l.b16 %v271
  %v352 = vunpack.c.l.b16 %v272
  %v353 = vunpack.c.l.b16 %v273
  %v354 = vunpack.c.l.b16 %v274
  %v355 = vunpack.c.l.b16 %v275
  %v356 = vunpack.c.l.b16 %v276
  %v357 = vunpack.c.l.b16 %v277
  %v358 = vunpack.c.l.b16 %v278
  %v359 = vpack.c.b16 %v344, %v343
  %v360 = vpack.c.b16 %v346, %v345
  %v361 = vpack.c.b16 %v348, %v347
  %v362 = vpack.c.b16 %v350, %v349
  %v363 = vpack.c.b16 %v352, %v351
  %v364 = vpack.c.b16 %v354, %v353
  %v365 = vpack.c.b16 %v356, %v355
  %v366 = vpack.c.b16 %v358, %v357
  %375 = vmatprep.subr.bf16.mxu0 0
  %376 = vmatpush1.bf16.msra.mxu0 %v366
  %377 = vmatprep.subr.bf16.mxu0 0
  %378 = vmatpush1.bf16.msra.mxu0 %v365
  %379 = vmatprep.subr.bf16.mxu0 0
  %380 = vmatpush1.bf16.msra.mxu0 %v364
  %381 = vmatprep.subr.bf16.mxu0 0
  %382 = vmatpush1.bf16.msra.mxu0 %v363
  %383 = vmatprep.subr.bf16.mxu0 0
  %384 = vmatpush1.bf16.msra.mxu0 %v362
  %385 = vmatprep.subr.bf16.mxu0 0
  %386 = vmatpush1.bf16.msra.mxu0 %v361
  %387 = vmatprep.subr.bf16.mxu0 0
  %388 = vmatpush1.bf16.msra.mxu0 %v360
  %389 = vmatprep.subr.bf16.mxu0 0
  %390 = vmatpush1.bf16.msra.mxu0 %v359
  %391 = vmatprep.subr.bf16.mxu0 0
  %392 = vmatpush2.bf16.msra.mxu0 0
  %393 = vmatprep.subr.bf16.mxu0 0
  %394 = vmatpush2.bf16.msra.mxu0 0
  %395 = vmatprep.subr.bf16.mxu0 0
  %396 = vmatpush2.bf16.msra.mxu0 0
  %397 = vmatprep.subr.bf16.mxu0 0
  %398 = vmatpush2.bf16.msra.mxu0 0
  %399 = vmatprep.subr.bf16.mxu0 0
  %400 = vmatpush2.bf16.msra.mxu0 0
  %401 = vmatprep.subr.bf16.mxu0 0
  %402 = vmatpush2.bf16.msra.mxu0 0
  %403 = vmatprep.subr.bf16.mxu0 0
  %404 = vmatpush2.bf16.msra.mxu0 0
  %405 = vmatprep.subr.bf16.mxu0 0
  %406 = vmatpush2.bf16.msra.mxu0 0
  %407 = vmatprep.mubr.bf16.mxu0 0
  %408 = vmatmul.mubr.bf16.gmra.mxu0 %v311
  %v409 = vpop.f32.mrf.mxu0
  %v410 = vadd.f32 0.0, %v409
  %v411 = vpop.f32.mrf.mxu0
  %v412 = vpop.f32.mrf.mxu0
  %v413 = vadd.f32 0.0, %v412
  %v414 = vpop.f32.mrf.mxu0
  %415 = vmatprep.mubr.bf16.mxu0 0
  %416 = vmatmul.mubr.bf16.gmra.mxu0 %v312
  %v417 = vpop.f32.mrf.mxu0
  %v418 = vadd.f32 0.0, %v417
  %v419 = vpop.f32.mrf.mxu0
  %v420 = vpop.f32.mrf.mxu0
  %v421 = vadd.f32 0.0, %v420
  %v422 = vpop.f32.mrf.mxu0
  %423 = vmatprep.mubr.bf16.mxu0 0
  %424 = vmatmul.mubr.bf16.gmra.mxu0 %v313
  %v425 = vpop.f32.mrf.mxu0
  %v426 = vadd.f32 0.0, %v425
  %v427 = vpop.f32.mrf.mxu0
  %v428 = vpop.f32.mrf.mxu0
  %v429 = vadd.f32 0.0, %v428
  %v430 = vpop.f32.mrf.mxu0
  %431 = vmatprep.mubr.bf16.mxu0 0
  %432 = vmatmul.mubr.bf16.gmra.mxu0 %v314
  %v433 = vpop.f32.mrf.mxu0
  %v434 = vadd.f32 0.0, %v433
  %v435 = vpop.f32.mrf.mxu0
  %v436 = vpop.f32.mrf.mxu0
  %v437 = vadd.f32 0.0, %v436
  %v438 = vpop.f32.mrf.mxu0
  %439 = vmatprep.mubr.bf16.mxu0 0
  %440 = vmatmul.mubr.bf16.gmra.mxu0 %v315
  %v441 = vpop.f32.mrf.mxu0
  %v442 = vadd.f32 0.0, %v441
  %v443 = vpop.f32.mrf.mxu0
  %v444 = vpop.f32.mrf.mxu0
  %v445 = vadd.f32 0.0, %v444
  %v446 = vpop.f32.mrf.mxu0
  %447 = vmatprep.mubr.bf16.mxu0 0
  %448 = vmatmul.mubr.bf16.gmra.mxu0 %v316
  %v449 = vpop.f32.mrf.mxu0
  %v450 = vadd.f32 0.0, %v449
  %v451 = vpop.f32.mrf.mxu0
  %v452 = vpop.f32.mrf.mxu0
  %v453 = vadd.f32 0.0, %v452
  %v454 = vpop.f32.mrf.mxu0
  %455 = vmatprep.mubr.bf16.mxu0 0
  %456 = vmatmul.mubr.bf16.gmra.mxu0 %v317
  %v457 = vpop.f32.mrf.mxu0
  %v458 = vadd.f32 0.0, %v457
  %v459 = vpop.f32.mrf.mxu0
  %v460 = vpop.f32.mrf.mxu0
  %v461 = vadd.f32 0.0, %v460
  %v462 = vpop.f32.mrf.mxu0
  %463 = vmatprep.mubr.bf16.mxu0 0
  %464 = vmatmul.mubr.bf16.gmra.mxu0 %v318
  %v465 = vpop.f32.mrf.mxu0
  %v466 = vadd.f32 0.0, %v465
  %v467 = vpop.f32.mrf.mxu0
  %v468 = vpop.f32.mrf.mxu0
  %v469 = vadd.f32 0.0, %v468
  %v470 = vpop.f32.mrf.mxu0
  %471 = vdwg.mxu0
  %v472 = vpack.c.bf16 %v188, %v185
  %v473 = vpack.c.bf16 %v196, %v193
  %v474 = vpack.c.bf16 %v204, %v201
  %v475 = vpack.c.bf16 %v212, %v209
  %v476 = vpack.c.bf16 %v220, %v217
  %v477 = vpack.c.bf16 %v228, %v225
  %v478 = vpack.c.bf16 %v236, %v233
  %v479 = vpack.c.bf16 %v244, %v241
  %v488 = vunpack.c.l.b16 %v472
  %v489 = vunpack.c.h.b16 %v472
  %v490 = vunpack.c.l.b16 %v473
  %v491 = vunpack.c.h.b16 %v473
  %v492 = vunpack.c.l.b16 %v474
  %v493 = vunpack.c.h.b16 %v474
  %v494 = vunpack.c.l.b16 %v475
  %v495 = vunpack.c.h.b16 %v475
  %v496 = vunpack.c.l.b16 %v476
  %v497 = vunpack.c.h.b16 %v476
  %v498 = vunpack.c.l.b16 %v477
  %v499 = vunpack.c.h.b16 %v477
  %v500 = vunpack.c.l.b16 %v478
  %v501 = vunpack.c.h.b16 %v478
  %v502 = vunpack.c.l.b16 %v479
  %v503 = vunpack.c.h.b16 %v479
  %v504 = vpack.c.b16 %v488, %v488
  %v505 = vpack.c.b16 %v489, %v489
  %v506 = vpack.c.b16 %v490, %v490
  %v507 = vpack.c.b16 %v491, %v491
  %v508 = vpack.c.b16 %v492, %v492
  %v509 = vpack.c.b16 %v493, %v493
  %v510 = vpack.c.b16 %v494, %v494
  %v511 = vpack.c.b16 %v495, %v495
  %v512 = vpack.c.b16 %v496, %v496
  %v513 = vpack.c.b16 %v497, %v497
  %v514 = vpack.c.b16 %v498, %v498
  %v515 = vpack.c.b16 %v499, %v499
  %v516 = vpack.c.b16 %v500, %v500
  %v517 = vpack.c.b16 %v501, %v501
  %v518 = vpack.c.b16 %v502, %v502
  %v519 = vpack.c.b16 %v503, %v503
  %536 = vst [vmem:[%s4] sm:$0xf] %v504
  %537 = vst [vmem:[%s4 + $0x4] sm:$0xf] %v505
  %538 = vst [vmem:[%s4 + $0x8] sm:$0xf] %v506
  %539 = vst [vmem:[%s4 + $0xc] sm:$0xf] %v507
  %540 = vst [vmem:[%s4 + $0x10] sm:$0xf] %v508
  %541 = vst [vmem:[%s4 + $0x14] sm:$0xf] %v509
  %542 = vst [vmem:[%s4 + $0x18] sm:$0xf] %v510
  %543 = vst [vmem:[%s4 + $0x1c] sm:$0xf] %v511
  %544 = vst [vmem:[%s4 + $0x20] sm:$0xf] %v512
  %545 = vst [vmem:[%s4 + $0x24] sm:$0xf] %v513
  %546 = vst [vmem:[%s4 + $0x28] sm:$0xf] %v514
  %547 = vst [vmem:[%s4 + $0x2c] sm:$0xf] %v515
  %548 = vst [vmem:[%s4 + $0x30] sm:$0xf] %v516
  %549 = vst [vmem:[%s4 + $0x34] sm:$0xf] %v517
  %550 = vst [vmem:[%s4 + $0x38] sm:$0xf] %v518
  %551 = vst [vmem:[%s4 + $0x3c] sm:$0xf] %v519
  %v552 = vpack.c.bf16 %v413, %v410
  %v553 = vpack.c.bf16 %v421, %v418
  %v554 = vpack.c.bf16 %v429, %v426
  %v555 = vpack.c.bf16 %v437, %v434
  %v556 = vpack.c.bf16 %v445, %v442
  %v557 = vpack.c.bf16 %v453, %v450
  %v558 = vpack.c.bf16 %v461, %v458
  %v559 = vpack.c.bf16 %v469, %v466
  %v568 = vunpack.c.l.b16 %v552
  %v569 = vunpack.c.h.b16 %v552
  %v570 = vunpack.c.l.b16 %v553
  %v571 = vunpack.c.h.b16 %v553
  %v572 = vunpack.c.l.b16 %v554
  %v573 = vunpack.c.h.b16 %v554
  %v574 = vunpack.c.l.b16 %v555
  %v575 = vunpack.c.h.b16 %v555
  %v576 = vunpack.c.l.b16 %v556
  %v577 = vunpack.c.h.b16 %v556
  %v578 = vunpack.c.l.b16 %v557
  %v579 = vunpack.c.h.b16 %v557
  %v580 = vunpack.c.l.b16 %v558
  %v581 = vunpack.c.h.b16 %v558
  %v582 = vunpack.c.l.b16 %v559
  %v583 = vunpack.c.h.b16 %v559
  %v584 = vpack.c.b16 %v568, %v568
  %v585 = vpack.c.b16 %v569, %v569
  %v586 = vpack.c.b16 %v570, %v570
  %v587 = vpack.c.b16 %v571, %v571
  %v588 = vpack.c.b16 %v572, %v572
  %v589 = vpack.c.b16 %v573, %v573
  %v590 = vpack.c.b16 %v574, %v574
  %v591 = vpack.c.b16 %v575, %v575
  %v592 = vpack.c.b16 %v576, %v576
  %v593 = vpack.c.b16 %v577, %v577
  %v594 = vpack.c.b16 %v578, %v578
  %v595 = vpack.c.b16 %v579, %v579
  %v596 = vpack.c.b16 %v580, %v580
  %v597 = vpack.c.b16 %v581, %v581
  %v598 = vpack.c.b16 %v582, %v582
  %v599 = vpack.c.b16 %v583, %v583
  %616 = vst [vmem:[%s5] sm:$0xf] %v584
  %617 = vst [vmem:[%s5 + $0x4] sm:$0xf] %v585
  %618 = vst [vmem:[%s5 + $0x8] sm:$0xf] %v586
  %619 = vst [vmem:[%s5 + $0xc] sm:$0xf] %v587
  %620 = vst [vmem:[%s5 + $0x10] sm:$0xf] %v588
  %621 = vst [vmem:[%s5 + $0x14] sm:$0xf] %v589
  %622 = vst [vmem:[%s5 + $0x18] sm:$0xf] %v590
  %623 = vst [vmem:[%s5 + $0x1c] sm:$0xf] %v591
  %624 = vst [vmem:[%s5 + $0x20] sm:$0xf] %v592
  %625 = vst [vmem:[%s5 + $0x24] sm:$0xf] %v593
  %626 = vst [vmem:[%s5 + $0x28] sm:$0xf] %v594
  %627 = vst [vmem:[%s5 + $0x2c] sm:$0xf] %v595
  %628 = vst [vmem:[%s5 + $0x30] sm:$0xf] %v596
  %629 = vst [vmem:[%s5 + $0x34] sm:$0xf] %v597
  %630 = vst [vmem:[%s5 + $0x38] sm:$0xf] %v598
  %631 = vst [vmem:[%s5 + $0x3c] sm:$0xf] %v599
  %v632 = vadd.f32 %v185, %v188
  %v633 = vadd.f32 %v632, %v193
  %v634 = vadd.f32 %v633, %v196
  %v635 = vadd.f32 %v634, %v201
  %v636 = vadd.f32 %v635, %v204
  %v637 = vadd.f32 %v636, %v209
  %v638 = vadd.f32 %v637, %v212
  %v639 = vadd.f32 %v638, %v217
  %v640 = vadd.f32 %v639, %v220
  %v641 = vadd.f32 %v640, %v225
  %v642 = vadd.f32 %v641, %v228
  %v643 = vadd.f32 %v642, %v233
  %v644 = vadd.f32 %v643, %v236
  %v645 = vadd.f32 %v644, %v241
  %v646 = vadd.f32 %v645, %v244
  %v647 = vrot.slane %v646, 4
  %v648 = vadd.f32 %v646, %v647
  %v649 = vrot.slane %v648, 2
  %v650 = vadd.f32 %v648, %v649
  %v651 = vrot.slane %v650, 1
  %v652 = vadd.f32 %v650, %v651
  %v653 = vmul.f32 %v185, %v185
  %v654 = vmul.f32 %v188, %v188
  %v655 = vmul.f32 %v193, %v193
  %v656 = vmul.f32 %v196, %v196
  %v657 = vmul.f32 %v201, %v201
  %v658 = vmul.f32 %v204, %v204
  %v659 = vmul.f32 %v209, %v209
  %v660 = vmul.f32 %v212, %v212
  %v661 = vmul.f32 %v217, %v217
  %v662 = vmul.f32 %v220, %v220
  %v663 = vmul.f32 %v225, %v225
  %v664 = vmul.f32 %v228, %v228
  %v665 = vmul.f32 %v233, %v233
  %v666 = vmul.f32 %v236, %v236
  %v667 = vmul.f32 %v241, %v241
  %v668 = vmul.f32 %v244, %v244
  %v669 = vadd.f32 %v653, %v654
  %v670 = vadd.f32 %v669, %v655
  %v671 = vadd.f32 %v670, %v656
  %v672 = vadd.f32 %v671, %v657
  %v673 = vadd.f32 %v672, %v658
  %v674 = vadd.f32 %v673, %v659
  %v675 = vadd.f32 %v674, %v660
  %v676 = vadd.f32 %v675, %v661
  %v677 = vadd.f32 %v676, %v662
  %v678 = vadd.f32 %v677, %v663
  %v679 = vadd.f32 %v678, %v664
  %v680 = vadd.f32 %v679, %v665
  %v681 = vadd.f32 %v680, %v666
  %v682 = vadd.f32 %v681, %v667
  %v683 = vadd.f32 %v682, %v668
  %v684 = vrot.slane %v683, 4
  %v685 = vadd.f32 %v683, %v684
  %v686 = vrot.slane %v685, 2
  %v687 = vadd.f32 %v685, %v686
  %v688 = vrot.slane %v687, 1
  %v689 = vadd.f32 %v687, %v688
  %vm690 = vcmask 1040384
  %v691 = vsel %vm690, %v652, %v689
  %692 = vst [vmem:[%s6] sm:$0x3] %v691
  %v693 = vadd.f32 %v410, %v413
  %v694 = vadd.f32 %v693, %v418
  %v695 = vadd.f32 %v694, %v421
  %v696 = vadd.f32 %v695, %v426
  %v697 = vadd.f32 %v696, %v429
  %v698 = vadd.f32 %v697, %v434
  %v699 = vadd.f32 %v698, %v437
  %v700 = vadd.f32 %v699, %v442
  %v701 = vadd.f32 %v700, %v445
  %v702 = vadd.f32 %v701, %v450
  %v703 = vadd.f32 %v702, %v453
  %v704 = vadd.f32 %v703, %v458
  %v705 = vadd.f32 %v704, %v461
  %v706 = vadd.f32 %v705, %v466
  %v707 = vadd.f32 %v706, %v469
  %v708 = vrot.slane %v707, 4
  %v709 = vadd.f32 %v707, %v708
  %v710 = vrot.slane %v709, 2
  %v711 = vadd.f32 %v709, %v710
  %v712 = vrot.slane %v711, 1
  %v713 = vadd.f32 %v711, %v712
  %v714 = vmul.f32 %v410, %v410
  %v715 = vmul.f32 %v413, %v413
  %v716 = vmul.f32 %v418, %v418
  %v717 = vmul.f32 %v421, %v421
  %v718 = vmul.f32 %v426, %v426
  %v719 = vmul.f32 %v429, %v429
  %v720 = vmul.f32 %v434, %v434
  %v721 = vmul.f32 %v437, %v437
  %v722 = vmul.f32 %v442, %v442
  %v723 = vmul.f32 %v445, %v445
  %v724 = vmul.f32 %v450, %v450
  %v725 = vmul.f32 %v453, %v453
  %v726 = vmul.f32 %v458, %v458
  %v727 = vmul.f32 %v461, %v461
  %v728 = vmul.f32 %v466, %v466
  %v729 = vmul.f32 %v469, %v469
  %v730 = vadd.f32 %v714, %v715
  %v731 = vadd.f32 %v730, %v716
  %v732 = vadd.f32 %v731, %v717
  %v733 = vadd.f32 %v732, %v718
  %v734 = vadd.f32 %v733, %v719
  %v735 = vadd.f32 %v734, %v720
  %v736 = vadd.f32 %v735, %v721
  %v737 = vadd.f32 %v736, %v722
  %v738 = vadd.f32 %v737, %v723
  %v739 = vadd.f32 %v738, %v724
  %v740 = vadd.f32 %v739, %v725
  %v741 = vadd.f32 %v740, %v726
  %v742 = vadd.f32 %v741, %v727
  %v743 = vadd.f32 %v742, %v728
  %v744 = vadd.f32 %v743, %v729
  %v745 = vrot.slane %v744, 4
  %v746 = vadd.f32 %v744, %v745
  %v747 = vrot.slane %v746, 2
  %v748 = vadd.f32 %v746, %v747
  %v749 = vrot.slane %v748, 1
  %v750 = vadd.f32 %v748, %v749
  %v751 = vsel %vm690, %v713, %v750
  %752 = vst [vmem:[%s7] sm:$0x3] %v751
  // Predicated region
  $region18: #{subnet_basic_block_forward.6} parent=0 // pred_check
    _
  $region19: #{subnet_basic_block_forward.6} parent=0 // pred_check_branch
    %754 = sbr.rel (0) target = $region21
  $region20: #{subnet_basic_block_forward.6} parent=0 // pred_region
    _
  $region21: #{subnet_basic_block_forward.6} parent=0 // pred_fallthru
    _
  // Predicated region
  $region22: #{subnet_basic_block_forward.6} parent=0 // pred_check
    _
  $region23: #{subnet_basic_block_forward.6} parent=0 // pred_check_branch
    %756 = sbr.rel (0) target = $region25
  $region24: #{subnet_basic_block_forward.6} parent=0 // pred_region
    _
  $region25: #{subnet_basic_block_forward.6} parent=0 // pred_fallthru
    _
  // Predicated region
  $region26: #{subnet_basic_block_forward.6} parent=0 // pred_check
    _
  $region27: #{subnet_basic_block_forward.6} parent=0 // pred_check_branch
    %758 = sbr.rel (0) target = $region29
  $region28: #{subnet_basic_block_forward.6} parent=0 // pred_region
    _
  $region29: #{subnet_basic_block_forward.6} parent=0 // pred_fallthru
    _
  // Predicated region
  $region30: #{subnet_basic_block_forward.6} parent=0 // pred_check
    _
  $region31: #{subnet_basic_block_forward.6} parent=0 // pred_check_branch
    %760 = sbr.rel (0) target = $region33
  $region32: #{subnet_basic_block_forward.6} parent=0 // pred_region
    _
  $region33: #{subnet_basic_block_forward.6} parent=0 // pred_fallthru
    _
  // Predicated region
  $region34: #{subnet_basic_block_forward.6} parent=0 // pred_check
    _
  $region35: #{subnet_basic_block_forward.6} parent=0 // pred_check_branch
    %762 = sbr.rel (0) target = $region37
  $region36: #{subnet_basic_block_forward.6} parent=0 // pred_region
    _
  $region37: #{subnet_basic_block_forward.6} parent=0 // pred_fallthru
    _
  // Predicated region
  $region38: #{subnet_basic_block_forward.6} parent=0 // pred_check
    _
  $region39: #{subnet_basic_block_forward.6} parent=0 // pred_check_branch
    %764 = sbr.rel (0) target = $region41
  $region40: #{subnet_basic_block_forward.6} parent=0 // pred_region
    _
  $region41: #{subnet_basic_block_forward.6} parent=0 // pred_fallthru
    _
  // Predicated region
  $region42: #{subnet_basic_block_forward.6} parent=0 // pred_check
    _
  $region43: #{subnet_basic_block_forward.6} parent=0 // pred_check_branch
    %766 = sbr.rel (0) target = $region45
  $region44: #{subnet_basic_block_forward.6} parent=0 // pred_region
    _
  $region45: #{subnet_basic_block_forward.6} parent=0 // pred_fallthru
    _
  // Predicated region
  $region46: #{subnet_basic_block_forward.6} parent=0 // pred_check
    _
  $region47: #{subnet_basic_block_forward.6} parent=0 // pred_check_branch
    %768 = sbr.rel (0) target = $region49
  $region48: #{subnet_basic_block_forward.6} parent=0 // pred_region
    _
  $region49: #{subnet_basic_block_forward.6} parent=0 // pred_fallthru
    _

</llo_original>
